<compile_context>
chip_gen: v5e
topology: v5e:2x2
jax: 0.10.0
libtpu: 0.0.40
codegen_flags: <defaults>
</compile_context>

<pallas_src>
import functools
import math

import jax
import jax.numpy as jnp
from jax.experimental import pallas as pl
from jax.experimental.pallas import tpu as pltpu

F32 = jnp.float32
BF16 = jnp.bfloat16
LN_EPS = 1e-5
VMEM_LIMIT = 32 * 1024 * 1024  # safe on v5e/v6e (128 MiB) and v7x (64 MiB)


def _cparams(n_axes):
    return pltpu.CompilerParams(
        dimension_semantics=("parallel",) * n_axes,
        vmem_limit_bytes=VMEM_LIMIT)


def _round_up(x, m):
    return ((x + m - 1) // m) * m


def _pick_row_tile(m, max_tile=256):
    """Return (padded_rows, row_tile): tile is a multiple of 8, up to max_tile."""
    mp = _round_up(m, 8)
    if mp <= max_tile:
        return mp, mp
    mp = _round_up(m, max_tile)
    return mp, max_tile


def _pick_col_tile(n):
    if n <= 512:
        return n
    for t in (512, 384, 256, 128):
        if n % t == 0:
            return t
    return n


def _pad_rows(x, rows):
    m = x.shape[0]
    if rows == m:
        return x
    pad = [(0, rows - m)] + [(0, 0)] * (x.ndim - 1)
    return jnp.pad(x, pad)


# ----------------------------------------------------------------------------
# Linear kernel: y = act(x @ W + b), tiled over rows and (optionally) columns.
# ----------------------------------------------------------------------------
def _linear_kernel(x_ref, w_ref, b_ref, o_ref, *, activation):
    y = jnp.dot(x_ref[...].astype(BF16), w_ref[...],
                preferred_element_type=jnp.float32)
    y = y + b_ref[...]
    if activation == "gelu":
        # TODO(synk): RoBERTa uses exact (erf) GELU; tanh approximation used here.
        y = jax.nn.gelu(y, approximate=True)
    o_ref[...] = y.astype(o_ref.dtype)


def linear(x, w, b, activation="none"):
    M, K = x.shape
    _, N = w.shape
    Mp, tile_m = _pick_row_tile(M)
    tile_n = _pick_col_tile(N)
    xp = _pad_rows(x, Mp)
    out = pl.pallas_call(
        functools.partial(_linear_kernel, activation=activation),
        out_shape=jax.ShapeDtypeStruct((Mp, N), F32),
        grid=(Mp // tile_m, N // tile_n),
        in_specs=[
            pl.BlockSpec((tile_m, K), lambda i, j: (i, 0)),
            pl.BlockSpec((K, tile_n), lambda i, j: (0, j)),
            pl.BlockSpec((1, tile_n), lambda i, j: (0, j)),
        ],
        out_specs=pl.BlockSpec((tile_m, tile_n), lambda i, j: (i, j)),
        compiler_params=_cparams(2),
    )(xp, w, b.reshape(1, N))
    return out[:M] if Mp != M else out


# ----------------------------------------------------------------------------
# Fused linear + bias + residual-add + LayerNorm kernel (matmul epilogue).
# ----------------------------------------------------------------------------
def _linear_add_ln_kernel(x_ref, w_ref, b_ref, r_ref, g_ref, bb_ref, o_ref):
    y = jnp.dot(x_ref[...].astype(BF16), w_ref[...],
                preferred_element_type=jnp.float32)
    h = y + b_ref[...] + r_ref[...].astype(jnp.float32)
    mu = jnp.mean(h, axis=-1, keepdims=True)
    var = jnp.mean(jnp.square(h - mu), axis=-1, keepdims=True)
    yn = (h - mu) * jax.lax.rsqrt(var + LN_EPS)
    o_ref[...] = (yn * g_ref[...] + bb_ref[...]).astype(o_ref.dtype)


def linear_add_layernorm(x, w, b, residual, gamma, beta):
    M, K = x.shape
    _, N = w.shape
    Mp, tile_m = _pick_row_tile(M)
    xp = _pad_rows(x, Mp)
    rp = _pad_rows(residual, Mp)
    out = pl.pallas_call(
        _linear_add_ln_kernel,
        out_shape=jax.ShapeDtypeStruct((Mp, N), F32),
        grid=(Mp // tile_m,),
        in_specs=[
            pl.BlockSpec((tile_m, K), lambda i: (i, 0)),
            pl.BlockSpec((K, N), lambda i: (0, 0)),
            pl.BlockSpec((1, N), lambda i: (0, 0)),
            pl.BlockSpec((tile_m, N), lambda i: (i, 0)),
            pl.BlockSpec((1, N), lambda i: (0, 0)),
            pl.BlockSpec((1, N), lambda i: (0, 0)),
        ],
        out_specs=pl.BlockSpec((tile_m, N), lambda i: (i, 0)),
        compiler_params=_cparams(1),
    )(xp, w, b.reshape(1, N), rp, gamma.reshape(1, N), beta.reshape(1, N))
    return out[:M] if Mp != M else out


# ----------------------------------------------------------------------------
# LayerNorm kernel (embedding LN), tiled over rows.
# ----------------------------------------------------------------------------
def _ln_kernel(x_ref, g_ref, b_ref, o_ref):
    h = x_ref[...].astype(jnp.float32)
    mu = jnp.mean(h, axis=-1, keepdims=True)
    var = jnp.mean(jnp.square(h - mu), axis=-1, keepdims=True)
    yn = (h - mu) * jax.lax.rsqrt(var + LN_EPS)
    o_ref[...] = (yn * g_ref[...] + b_ref[...]).astype(o_ref.dtype)


def layernorm(x, gamma, beta):
    M, H = x.shape
    Mp, tile_m = _pick_row_tile(M)
    xp = _pad_rows(x, Mp)
    out = pl.pallas_call(
        _ln_kernel,
        out_shape=jax.ShapeDtypeStruct((Mp, H), F32),
        grid=(Mp // tile_m,),
        in_specs=[pl.BlockSpec((tile_m, H), lambda i: (i, 0)),
                  pl.BlockSpec((1, H), lambda i: (0, 0)),
                  pl.BlockSpec((1, H), lambda i: (0, 0))],
        out_specs=pl.BlockSpec((tile_m, H), lambda i: (i, 0)),
        compiler_params=_cparams(1),
    )(xp, gamma.reshape(1, H), beta.reshape(1, H))
    return out[:M] if Mp != M else out


# ----------------------------------------------------------------------------
# Self-attention: one batch item per grid step, all heads batched in-kernel.
# ----------------------------------------------------------------------------
def _attn_kernel(q_ref, k_ref, v_ref, m_ref, o_ref, *, scale):
    # q/k/v/o blocks: (1, heads, S, d); mask block: (1, 1, S)
    q = q_ref[0].astype(BF16)                     # (heads, S, d)
    k = k_ref[0].astype(BF16)
    v = v_ref[0].astype(BF16)
    mask = m_ref[0].astype(jnp.float32)           # (1, S)
    s = jnp.einsum("hqd,hkd->hqk", q, k,
                   preferred_element_type=jnp.float32) * scale
    s = s + (1.0 - mask)[None, :, :] * (-1e9)
    s = s - jnp.max(s, axis=-1, keepdims=True)
    p = jnp.exp(s)
    p = p * pl.reciprocal(jnp.sum(p, axis=-1, keepdims=True), approx=True)
    ctx = jnp.einsum("hqk,hkd->hqd", p.astype(BF16), v,
                     preferred_element_type=jnp.float32)
    o_ref[0] = ctx.astype(o_ref.dtype)


def attention(q, k, v, mask, scale):
    # TODO(synk): for long sequences add flash-style kv tiling; full-S blocks here.
    N, heads, S, d = q.shape
    return pl.pallas_call(
        functools.partial(_attn_kernel, scale=scale),
        out_shape=jax.ShapeDtypeStruct((N, heads, S, d), F32),
        grid=(N,),
        in_specs=[pl.BlockSpec((1, heads, S, d), lambda i: (i, 0, 0, 0)),
                  pl.BlockSpec((1, heads, S, d), lambda i: (i, 0, 0, 0)),
                  pl.BlockSpec((1, heads, S, d), lambda i: (i, 0, 0, 0)),
                  pl.BlockSpec((1, 1, S), lambda i: (i, 0, 0))],
        out_specs=pl.BlockSpec((1, heads, S, d), lambda i: (i, 0, 0, 0)),
        compiler_params=_cparams(1),
    )(q, k, v, mask)


# ----------------------------------------------------------------------------
# Masked mean pooling + L2 normalize (mean_pooling + F.normalize), row tiled.
# ----------------------------------------------------------------------------
def _pool_norm_kernel(emb_ref, mask_ref, o_ref):
    emb = emb_ref[...].astype(jnp.float32)        # (T, S, H)
    m = mask_ref[...].astype(jnp.float32)         # (T, S, 1)
    summed = jnp.sum(emb * m, axis=1)                          # (T, H)
    denom = jnp.maximum(jnp.sum(m, axis=1), 1e-9)              # (T, 1)
    pooled = summed / denom
    inv_norm = jax.lax.rsqrt(
        jnp.maximum(jnp.sum(pooled * pooled, axis=1, keepdims=True), 1e-24))
    o_ref[...] = (pooled * inv_norm).astype(o_ref.dtype)


def pool_normalize(emb, mask):
    N, S, H = emb.shape
    Np, tile = _pick_row_tile(N)
    emb_p = _pad_rows(emb, Np)
    mask_p = _pad_rows(mask.astype(F32).reshape(N, S, 1), Np)
    out = pl.pallas_call(
        _pool_norm_kernel,
        out_shape=jax.ShapeDtypeStruct((Np, H), F32),
        grid=(Np // tile,),
        in_specs=[pl.BlockSpec((tile, S, H), lambda i: (i, 0, 0)),
                  pl.BlockSpec((tile, S, 1), lambda i: (i, 0, 0))],
        out_specs=pl.BlockSpec((tile, H), lambda i: (i, 0)),
        compiler_params=_cparams(1),
    )(emb_p, mask_p)
    return out[:N] if Np != N else out


# ----------------------------------------------------------------------------
# LinkPredHead: sigmoid(out_proj(tanh(dense(x_i * x_j)))); out_proj done as a
# VPU reduction (a 1-wide MXU matmul would waste the array).
# ----------------------------------------------------------------------------
def _link_head_kernel(xi_ref, xj_ref, w1_ref, b1_ref, w2_ref, b2_ref, o_ref):
    x = (xi_ref[...] * xj_ref[...]).astype(BF16)
    h = jnp.tanh(jnp.dot(x, w1_ref[...], preferred_element_type=jnp.float32)
                 + b1_ref[...])
    logits = jnp.sum(h * w2_ref[...], axis=-1, keepdims=True) + b2_ref[...]
    o_ref[...] = jax.nn.sigmoid(logits).astype(o_ref.dtype)


def link_predict(params, xi, xj):
    N, H = xi.shape
    head = params["head"]
    Np, tile = _pick_row_tile(N)
    xi_p = _pad_rows(xi, Np)
    xj_p = _pad_rows(xj, Np)
    out = pl.pallas_call(
        _link_head_kernel,
        out_shape=jax.ShapeDtypeStruct((Np, 1), F32),
        grid=(Np // tile,),
        in_specs=[pl.BlockSpec((tile, H), lambda i: (i, 0)),
                  pl.BlockSpec((tile, H), lambda i: (i, 0)),
                  pl.BlockSpec((H, H), lambda i: (0, 0)),
                  pl.BlockSpec((1, H), lambda i: (0, 0)),
                  pl.BlockSpec((1, H), lambda i: (0, 0)),
                  pl.BlockSpec((1, 1), lambda i: (0, 0))],
        out_specs=pl.BlockSpec((tile, 1), lambda i: (i, 0)),
        compiler_params=_cparams(1),
    )(xi_p, xj_p, head["w1"], head["b1"].reshape(1, H),
      head["w2"].reshape(1, H), head["b2"].reshape(1, 1))
    return out[:N, 0]  # LinkPredHead squeezes the trailing dim


# ----------------------------------------------------------------------------
# RoBERTa-style encoder built from the Pallas kernels above.
# ----------------------------------------------------------------------------
def roberta_encode(params, ids, mask, cfg):
    N, S = ids.shape
    H = cfg["hidden"]
    heads = cfg["heads"]
    d = H // heads
    pad_id = cfg["pad_id"]

    # --- embeddings (gathers are glue, in plain JAX) ---
    m_int = (ids != pad_id).astype(jnp.int32)
    pos_ids = jnp.cumsum(m_int, axis=1) * m_int + pad_id   # RoBERTa position ids
    pos_ids = jnp.minimum(pos_ids, cfg["max_pos"] - 1)     # clamp for safety
    emb = (jnp.take(params["word_emb"], ids, axis=0)
           + jnp.take(params["pos_emb"], pos_ids, axis=0)
           + params["type_emb"][0][None, None, :])
    x = layernorm(emb.reshape(N * S, H), params["emb_ln_g"], params["emb_ln_b"])

    attn_mask = mask.astype(F32)[:, None, :]               # (N, 1, S)
    scale = 1.0 / math.sqrt(d)

    for lp in params["layers"]:
        # fused QKV projection: one (H, 3H) matmul
        qkv = linear(x, lp["wqkv"], lp["bqkv"])             # (N*S, 3H)
        qkv = qkv.reshape(N, S, 3, heads, d)
        q = qkv[:, :, 0].transpose(0, 2, 1, 3)              # (N, heads, S, d)
        k = qkv[:, :, 1].transpose(0, 2, 1, 3)
        v = qkv[:, :, 2].transpose(0, 2, 1, 3)

        ctx = attention(q, k, v, attn_mask, scale)          # (N, heads, S, d)
        ctx = ctx.transpose(0, 2, 1, 3).reshape(N * S, H)

        # attention output projection fused with residual + LayerNorm
        x = linear_add_layernorm(ctx, lp["wo"], lp["bo"], x,
                                 lp["ln1_g"], lp["ln1_b"])

        inter = linear(x, lp["wi"], lp["bi"], activation="gelu")
        # FFN down projection fused with residual + LayerNorm
        x = linear_add_layernorm(inter, lp["wf"], lp["bf"], x,
                                 lp["ln2_g"], lp["ln2_b"])

    return x.reshape(N, S, H)


def infer_h(params, ids, mask, cfg):
    tok = roberta_encode(params, ids, mask, cfg)            # bert_model(...)
    return pool_normalize(tok, mask)                        # mean_pooling + F.normalize


def link_roberta_forward(params, input_ids, att_mask, cfg):
    if input_ids.ndim == 2:                                 # only_infer path
        return infer_h(params, input_ids, att_mask, cfg)
    B, num_samples, S = input_ids.shape
    num_neg = num_samples - 2
    ids = input_ids.reshape(-1, S)
    mask = att_mask.reshape(-1, S)
    h = infer_h(params, ids, mask, cfg)
    H = h.shape[-1]
    h = h.reshape(B, num_samples, H)
    pos_out = link_predict(params, h[:, 0, :], h[:, 1, :])
    src_h = jnp.repeat(h[:, 0, :], num_neg, axis=0).reshape(-1, H)
    dst_h = h[:, 2:, :].reshape(-1, H)
    neg_out = link_predict(params, src_h, dst_h).reshape(B, -1)
    return pos_out, neg_out


# ----------------------------------------------------------------------------
# Deterministic synthetic parameter init (shapes implied by the module).
# Matmul weights are stored in bf16 (MXU operands); biases / LN params in f32.
# ----------------------------------------------------------------------------
def init_params(key, cfg):
    H, I = cfg["hidden"], cfg["inter"]
    vocab, max_pos, n_layers = cfg["vocab"], cfg["max_pos"], cfg["layers"]

    def nxt():
        nonlocal key
        key, sub = jax.random.split(key)
        return sub

    def dense(din, dout):
        w = (0.02 * jax.random.normal(nxt(), (din, dout), F32)).astype(BF16)
        return w, jnp.zeros((dout,), F32)

    params = {
        "word_emb": 0.02 * jax.random.normal(nxt(), (vocab, H), F32),
        "pos_emb": 0.02 * jax.random.normal(nxt(), (max_pos, H), F32),
        "type_emb": 0.02 * jax.random.normal(nxt(), (2, H), F32),
        "emb_ln_g": jnp.ones((H,), F32),
        "emb_ln_b": jnp.zeros((H,), F32),
        "layers": [],
    }
    for _ in range(n_layers):
        wqkv, bqkv = dense(H, 3 * H)
        wo, bo = dense(H, H)
        wi, bi = dense(H, I)
        wf, bf_ = dense(I, H)
        params["layers"].append(dict(
            wqkv=wqkv, bqkv=bqkv, wo=wo, bo=bo,
            ln1_g=jnp.ones((H,), F32), ln1_b=jnp.zeros((H,), F32),
            wi=wi, bi=bi, wf=wf, bf=bf_,
            ln2_g=jnp.ones((H,), F32), ln2_b=jnp.zeros((H,), F32)))
    w1, b1 = dense(H, H)
    w2 = 0.02 * jax.random.normal(nxt(), (H,), F32)   # out_proj row (VPU reduce)
    b2 = jnp.zeros((1,), F32)
    params["head"] = dict(w1=w1, b1=b1, w2=w2, b2=b2)
    return params


if __name__ == "__main__":
    cfg = dict(vocab=50, hidden=32, inter=64, heads=2, layers=2, max_pos=16, pad_id=1)
    B, num_samples, S = 2, 4, 8          # [pos_src, pos_dst, 2 negative samples]

    key = jax.random.PRNGKey(0)
    pkey, ikey = jax.random.split(key)
    params = init_params(pkey, cfg)

    input_ids = jax.random.randint(ikey, (B, num_samples, S), 3, cfg["vocab"],
                                   dtype=jnp.int32)
    att_mask = jnp.ones((B, num_samples, S), jnp.int32)
    att_mask = att_mask.at[:, :, -1].set(0)              # pad last token
    input_ids = jnp.where(att_mask == 0, cfg["pad_id"], input_ids)

    fwd = jax.jit(lambda p, i, m: link_roberta_forward(p, i, m, cfg))
    pos_out, neg_out = fwd(params, input_ids, att_mask)
    jax.block_until_ready((pos_out, neg_out))

    assert pos_out.shape == (B,), pos_out.shape
    assert neg_out.shape == (B, num_samples - 2), neg_out.shape
    assert bool(jnp.all(jnp.isfinite(pos_out))) and bool(jnp.all(jnp.isfinite(neg_out)))
    print("KERNEL_OK")
</pallas_src>

<mosaic_0001>
module attributes {stable_mosaic.version = 11 : i64} {
  func.func @_linear_kernel(%arg0: i32, %arg1: i32, %arg2: memref<64x32xf32, #tpu.memory_space<vmem>>, %arg3: memref<32x96xbf16, #tpu.memory_space<vmem>>, %arg4: memref<1x96xf32, #tpu.memory_space<vmem>>, %arg5: memref<64x96xf32, #tpu.memory_space<vmem>>) attributes {dimension_semantics = [#tpu.dimension_semantics<parallel>, #tpu.dimension_semantics<parallel>], iteration_bounds = array<i64: 1, 1>, scalar_prefetch = 0 : i64, scratch_operands = 0 : i64, tpu.core_type = #tpu.core_type<tc>, window_params = [{transform_indices = @transform_0, window_bounds = array<i64: 64, 32>}, {transform_indices = @transform_1, window_bounds = array<i64: 32, 96>}, {transform_indices = @transform_2, window_bounds = array<i64: 1, 96>}, {transform_indices = @transform_3, window_bounds = array<i64: 64, 96>}]} {
    %c0 = arith.constant 0 : index
    %c0_0 = arith.constant 0 : index
    %0 = vector.load %arg2[%c0, %c0_0] : memref<64x32xf32, #tpu.memory_space<vmem>>, vector<64x32xf32>
    %1 = arith.truncf %0 : vector<64x32xf32> to vector<64x32xbf16>
    %c0_1 = arith.constant 0 : index
    %c0_2 = arith.constant 0 : index
    %2 = vector.load %arg3[%c0_1, %c0_2] : memref<32x96xbf16, #tpu.memory_space<vmem>>, vector<32x96xbf16>
    %cst = arith.constant dense<0.000000e+00> : vector<64x96xf32>
    %3 = tpu.matmul %1, %2, %cst {dimension_numbers = #tpu.dot_dimension_numbers<[1], [0], [0], [1], [0, 0, 1, 1], [], []>} : vector<64x32xbf16>, vector<32x96xbf16>, vector<64x96xf32> -> vector<64x96xf32>
    %c0_3 = arith.constant 0 : index
    %c0_4 = arith.constant 0 : index
    %4 = vector.load %arg4[%c0_3, %c0_4] : memref<1x96xf32, #tpu.memory_space<vmem>>, vector<1x96xf32>
    %5 = vector.broadcast %4 : vector<1x96xf32> to vector<64x96xf32>
    %6 = arith.addf %3, %5 : vector<64x96xf32>
    %c0_5 = arith.constant 0 : index
    %c0_6 = arith.constant 0 : index
    %7 = vector.load %arg5[%c0_5, %c0_6] : memref<64x96xf32, #tpu.memory_space<vmem>>, vector<64x96xf32>
    tpu.vector_store %arg5[%c0_5, %c0_6], %6 {strides = array<i32>} : memref<64x96xf32, #tpu.memory_space<vmem>>, vector<64x96xf32>,
    return
  }
  func.func @transform_0(%arg0: i32, %arg1: i32) -> (i32, i32) {
    %c0_i32 = arith.constant 0 : i32
    %c0_i32_0 = arith.constant 0 : i32
    return %arg0, %c0_i32 : i32, i32
  }
  func.func @transform_1(%arg0: i32, %arg1: i32) -> (i32, i32) {
    %c0_i32 = arith.constant 0 : i32
    %c0_i32_0 = arith.constant 0 : i32
    return %c0_i32, %arg1 : i32, i32
  }
  func.func @transform_2(%arg0: i32, %arg1: i32) -> (i32, i32) {
    %c0_i32 = arith.constant 0 : i32
    %c0_i32_0 = arith.constant 0 : i32
    return %c0_i32, %arg1 : i32, i32
  }
  func.func @transform_3(%arg0: i32, %arg1: i32) -> (i32, i32) {
    %c0_i32 = arith.constant 0 : i32
    return %arg0, %arg1 : i32, i32
  }
}

module attributes {stable_mosaic.version = 11 : i64} {
  func.func @_ln_kernel(%arg0: i32, %arg1: memref<64x32xf32, #tpu.memory_space<vmem>>, %arg2: memref<1x32xf32, #tpu.memory_space<vmem>>, %arg3: memref<1x32xf32, #tpu.memory_space<vmem>>, %arg4: memref<64x32xf32, #tpu.memory_space<vmem>>) attributes {dimension_semantics = [#tpu.dimension_semantics<parallel>], iteration_bounds = array<i64: 1>, scalar_prefetch = 0 : i64, scratch_operands = 0 : i64, tpu.core_type = #tpu.core_type<tc>, window_params = [{transform_indices = @transform_0, window_bounds = array<i64: 64, 32>}, {pipeline_mode = #tpu.pipeline_mode<synchronous>, transform_indices = @transform_1, window_bounds = array<i64: 1, 32>}, {pipeline_mode = #tpu.pipeline_mode<synchronous>, transform_indices = @transform_2, window_bounds = array<i64: 1, 32>}, {transform_indices = @transform_3, window_bounds = array<i64: 64, 32>}]} {
    %c0 = arith.constant 0 : index
    %c0_0 = arith.constant 0 : index
    %0 = vector.load %arg1[%c0, %c0_0] : memref<64x32xf32, #tpu.memory_space<vmem>>, vector<64x32xf32>
    %cst = arith.constant dense<0.000000e+00> : vector<64xf32>
    %1 = vector.multi_reduction <add>, %0, %cst [1] : vector<64x32xf32> to vector<64xf32>
    %2 = vector.shape_cast %1 : vector<64xf32> to vector<64x1xf32>
    %cst_1 = arith.constant 3.200000e+01 : f32
    %3 = vector.broadcast %cst_1 : f32 to vector<64x1xf32>
    %4 = arith.divf %2, %3 : vector<64x1xf32>
    %5 = vector.broadcast %4 : vector<64x1xf32> to vector<64x32xf32>
    %6 = arith.subf %0, %5 : vector<64x32xf32>
    %7 = arith.mulf %6, %6 : vector<64x32xf32>
    %cst_2 = arith.constant dense<0.000000e+00> : vector<64xf32>
    %8 = vector.multi_reduction <add>, %7, %cst_2 [1] : vector<64x32xf32> to vector<64xf32>
    %9 = vector.shape_cast %8 : vector<64xf32> to vector<64x1xf32>
    %cst_3 = arith.constant 3.200000e+01 : f32
    %10 = vector.broadcast %cst_3 : f32 to vector<64x1xf32>
    %11 = arith.divf %9, %10 : vector<64x1xf32>
    %12 = vector.broadcast %4 : vector<64x1xf32> to vector<64x32xf32>
    %13 = arith.subf %0, %12 : vector<64x32xf32>
    %cst_4 = arith.constant 9.99999974E-6 : f32
    %14 = vector.broadcast %cst_4 : f32 to vector<64x1xf32>
    %15 = arith.addf %11, %14 : vector<64x1xf32>
    %16 = math.rsqrt %15 : vector<64x1xf32>
    %17 = vector.broadcast %16 : vector<64x1xf32> to vector<64x32xf32>
    %18 = arith.mulf %13, %17 : vector<64x32xf32>
    %c0_5 = arith.constant 0 : index
    %c0_6 = arith.constant 0 : index
    %19 = vector.load %arg2[%c0_5, %c0_6] : memref<1x32xf32, #tpu.memory_space<vmem>>, vector<1x32xf32>
    %20 = vector.broadcast %19 : vector<1x32xf32> to vector<64x32xf32>
    %21 = arith.mulf %18, %20 : vector<64x32xf32>
    %c0_7 = arith.constant 0 : index
    %c0_8 = arith.constant 0 : index
    %22 = vector.load %arg3[%c0_7, %c0_8] : memref<1x32xf32, #tpu.memory_space<vmem>>, vector<1x32xf32>
    %23 = vector.broadcast %22 : vector<1x32xf32> to vector<64x32xf32>
    %24 = arith.addf %21, %23 : vector<64x32xf32>
    %c0_9 = arith.constant 0 : index
    %c0_10 = arith.constant 0 : index
    %25 = vector.load %arg4[%c0_9, %c0_10] : memref<64x32xf32, #tpu.memory_space<vmem>>, vector<64x32xf32>
    tpu.vector_store %arg4[%c0_9, %c0_10], %24 {strides = array<i32>} : memref<64x32xf32, #tpu.memory_space<vmem>>, vector<64x32xf32>,
    return
  }
  func.func @transform_0(%arg0: i32) -> (i32, i32) {
    %c0_i32 = arith.constant 0 : i32
    %c0_i32_0 = arith.constant 0 : i32
    return %arg0, %c0_i32 : i32, i32
  }
  func.func @transform_1(%arg0: i32) -> (i32, i32) {
    %c0_i32 = arith.constant 0 : i32
    %c0_i32_0 = arith.constant 0 : i32
    %c0_i32_1 = arith.constant 0 : i32
    return %c0_i32, %c0_i32_0 : i32, i32
  }
  func.func @transform_2(%arg0: i32) -> (i32, i32) {
    %c0_i32 = arith.constant 0 : i32
    %c0_i32_0 = arith.constant 0 : i32
    %c0_i32_1 = arith.constant 0 : i32
    return %c0_i32, %c0_i32_0 : i32, i32
  }
  func.func @transform_3(%arg0: i32) -> (i32, i32) {
    %c0_i32 = arith.constant 0 : i32
    %c0_i32_0 = arith.constant 0 : i32
    return %arg0, %c0_i32 : i32, i32
  }
}

module attributes {stable_mosaic.version = 11 : i64} {
  func.func @_attn_kernel(%arg0: i32, %arg1: memref<1x2x8x16xf32, #tpu.memory_space<vmem>>, %arg2: memref<1x2x8x16xf32, #tpu.memory_space<vmem>>, %arg3: memref<1x2x8x16xf32, #tpu.memory_space<vmem>>, %arg4: memref<1x1x8xf32, #tpu.memory_space<vmem>>, %arg5: memref<1x2x8x16xf32, #tpu.memory_space<vmem>>) attributes {dimension_semantics = [#tpu.dimension_semantics<parallel>], iteration_bounds = array<i64: 8>, scalar_prefetch = 0 : i64, scratch_operands = 0 : i64, tpu.core_type = #tpu.core_type<tc>, window_params = [{transform_indices = @transform_0, window_bounds = array<i64: 1, 2, 8, 16>}, {transform_indices = @transform_1, window_bounds = array<i64: 1, 2, 8, 16>}, {transform_indices = @transform_2, window_bounds = array<i64: 1, 2, 8, 16>}, {transform_indices = @transform_3, window_bounds = array<i64: 1, 1, 8>}, {transform_indices = @transform_4, window_bounds = array<i64: 1, 2, 8, 16>}]} {
    %c0 = arith.constant 0 : index
    %c0_0 = arith.constant 0 : index
    %c0_1 = arith.constant 0 : index
    %c0_2 = arith.constant 0 : index
    %0 = vector.load %arg1[%c0, %c0_0, %c0_1, %c0_2] : memref<1x2x8x16xf32, #tpu.memory_space<vmem>>, vector<1x2x8x16xf32>
    %1 = vector.shape_cast %0 : vector<1x2x8x16xf32> to vector<2x8x16xf32>
    %2 = arith.truncf %1 : vector<2x8x16xf32> to vector<2x8x16xbf16>
    %c0_3 = arith.constant 0 : index
    %c0_4 = arith.constant 0 : index
    %c0_5 = arith.constant 0 : index
    %c0_6 = arith.constant 0 : index
    %3 = vector.load %arg2[%c0_3, %c0_4, %c0_5, %c0_6] : memref<1x2x8x16xf32, #tpu.memory_space<vmem>>, vector<1x2x8x16xf32>
    %4 = vector.shape_cast %3 : vector<1x2x8x16xf32> to vector<2x8x16xf32>
    %5 = arith.truncf %4 : vector<2x8x16xf32> to vector<2x8x16xbf16>
    %c0_7 = arith.constant 0 : index
    %c0_8 = arith.constant 0 : index
    %c0_9 = arith.constant 0 : index
    %c0_10 = arith.constant 0 : index
    %6 = vector.load %arg3[%c0_7, %c0_8, %c0_9, %c0_10] : memref<1x2x8x16xf32, #tpu.memory_space<vmem>>, vector<1x2x8x16xf32>
    %7 = vector.shape_cast %6 : vector<1x2x8x16xf32> to vector<2x8x16xf32>
    %8 = arith.truncf %7 : vector<2x8x16xf32> to vector<2x8x16xbf16>
    %c0_11 = arith.constant 0 : index
    %c0_12 = arith.constant 0 : index
    %c0_13 = arith.constant 0 : index
    %9 = vector.load %arg4[%c0_11, %c0_12, %c0_13] : memref<1x1x8xf32, #tpu.memory_space<vmem>>, vector<1x1x8xf32>
    %10 = vector.shape_cast %9 : vector<1x1x8xf32> to vector<1x8xf32>
    "tpu.trace_start"() <{level = 10 : i32, message = "hqd,hkd->hqk"}> : () -> ()
    %cst = arith.constant dense<0.000000e+00> : vector<2x8x8xf32>
    %11 = tpu.matmul %2, %5, %cst {dimension_numbers = #tpu.dot_dimension_numbers<[2], [2], [1], [1], [0, 0, 0, 1, 1, 1], [0], [0]>} : vector<2x8x16xbf16>, vector<2x8x16xbf16>, vector<2x8x8xf32> -> vector<2x8x8xf32>
    "tpu.trace_stop"() : () -> ()
    %cst_14 = arith.constant 2.500000e-01 : f32
    %12 = vector.broadcast %cst_14 : f32 to vector<2x8x8xf32>
    %13 = arith.mulf %11, %12 : vector<2x8x8xf32>
    %cst_15 = arith.constant 1.000000e+00 : f32
    %14 = vector.broadcast %cst_15 : f32 to vector<1x8xf32>
    %15 = arith.subf %14, %10 : vector<1x8xf32>
    %16 = vector.shape_cast %15 : vector<1x8xf32> to vector<1x1x8xf32>
    %cst_16 = arith.constant -1.000000e+09 : f32
    %17 = vector.broadcast %cst_16 : f32 to vector<1x1x8xf32>
    %18 = arith.mulf %16, %17 : vector<1x1x8xf32>
    %19 = vector.broadcast %18 : vector<1x1x8xf32> to vector<2x8x8xf32>
    %20 = arith.addf %13, %19 : vector<2x8x8xf32>
    %cst_17 = arith.constant dense<0xFF800000> : vector<2x8xf32>
    %21 = vector.multi_reduction <maximumf>, %20, %cst_17 [2] : vector<2x8x8xf32> to vector<2x8xf32>
    %22 = vector.shape_cast %21 : vector<2x8xf32> to vector<2x8x1xf32>
    %23 = vector.broadcast %22 : vector<2x8x1xf32> to vector<2x8x8xf32>
    %24 = arith.subf %20, %23 : vector<2x8x8xf32>
    %25 = math.exp %24 : vector<2x8x8xf32>
    %cst_18 = arith.constant dense<0.000000e+00> : vector<2x8xf32>
    %26 = vector.multi_reduction <add>, %25, %cst_18 [2] : vector<2x8x8xf32> to vector<2x8xf32>
    %27 = vector.shape_cast %26 : vector<2x8xf32> to vector<2x8x1xf32>
    %28 = tpu.reciprocal %27 {approx = true} : vector<2x8x1xf32> -> vector<2x8x1xf32>
    %29 = vector.broadcast %28 : vector<2x8x1xf32> to vector<2x8x8xf32>
    %30 = arith.mulf %25, %29 : vector<2x8x8xf32>
    %31 = arith.truncf %30 : vector<2x8x8xf32> to vector<2x8x8xbf16>
    "tpu.trace_start"() <{level = 10 : i32, message = "hqk,hkd->hqd"}> : () -> ()
    %cst_19 = arith.constant dense<0.000000e+00> : vector<2x8x16xf32>
    %32 = tpu.matmul %31, %8, %cst_19 {dimension_numbers = #tpu.dot_dimension_numbers<[2], [1], [1], [2], [0, 0, 0, 1, 1, 2], [0], [0]>} : vector<2x8x8xbf16>, vector<2x8x16xbf16>, vector<2x8x16xf32> -> vector<2x8x16xf32>
    "tpu.trace_stop"() : () -> ()
    %c0_20 = arith.constant 0 : index
    %c0_21 = arith.constant 0 : index
    %c0_22 = arith.constant 0 : index
    %c0_23 = arith.constant 0 : index
    %33 = vector.load %arg5[%c0_20, %c0_21, %c0_22, %c0_23] : memref<1x2x8x16xf32, #tpu.memory_space<vmem>>, vector<1x2x8x16xf32>
    %34 = vector.shape_cast %33 : vector<1x2x8x16xf32> to vector<2x8x16xf32>
    %35 = vector.shape_cast %32 : vector<2x8x16xf32> to vector<1x2x8x16xf32>
    tpu.vector_store %arg5[%c0_20, %c0_21, %c0_22, %c0_23], %35 {strides = array<i32>} : memref<1x2x8x16xf32, #tpu.memory_space<vmem>>, vector<1x2x8x16xf32>,
    return
  }
  func.func @transform_0(%arg0: i32) -> (i32, i32, i32, i32) {
    %c0_i32 = arith.constant 0 : i32
    %c0_i32_0 = arith.constant 0 : i32
    %c0_i32_1 = arith.constant 0 : i32
    %c0_i32_2 = arith.constant 0 : i32
    return %arg0, %c0_i32, %c0_i32_0, %c0_i32_1 : i32, i32, i32, i32
  }
  func.func @transform_1(%arg0: i32) -> (i32, i32, i32, i32) {
    %c0_i32 = arith.constant 0 : i32
    %c0_i32_0 = arith.constant 0 : i32
    %c0_i32_1 = arith.constant 0 : i32
    %c0_i32_2 = arith.constant 0 : i32
    return %arg0, %c0_i32, %c0_i32_0, %c0_i32_1 : i32, i32, i32, i32
  }
  func.func @transform_2(%arg0: i32) -> (i32, i32, i32, i32) {
    %c0_i32 = arith.constant 0 : i32
    %c0_i32_0 = arith.constant 0 : i32
    %c0_i32_1 = arith.constant 0 : i32
    %c0_i32_2 = arith.constant 0 : i32
    return %arg0, %c0_i32, %c0_i32_0, %c0_i32_1 : i32, i32, i32, i32
  }
  func.func @transform_3(%arg0: i32) -> (i32, i32, i32) {
    %c0_i32 = arith.constant 0 : i32
    %c0_i32_0 = arith.constant 0 : i32
    %c0_i32_1 = arith.constant 0 : i32
    return %arg0, %c0_i32, %c0_i32_0 : i32, i32, i32
  }
  func.func @transform_4(%arg0: i32) -> (i32, i32, i32, i32) {
    %c0_i32 = arith.constant 0 : i32
    %c0_i32_0 = arith.constant 0 : i32
    %c0_i32_1 = arith.constant 0 : i32
    %c0_i32_2 = arith.constant 0 : i32
    return %arg0, %c0_i32, %c0_i32_0, %c0_i32_1 : i32, i32, i32, i32
  }
}

module attributes {stable_mosaic.version = 11 : i64} {
  func.func @_linear_add_ln_kernel(%arg0: i32, %arg1: memref<64x32xf32, #tpu.memory_space<vmem>>, %arg2: memref<32x32xbf16, #tpu.memory_space<vmem>>, %arg3: memref<1x32xf32, #tpu.memory_space<vmem>>, %arg4: memref<64x32xf32, #tpu.memory_space<vmem>>, %arg5: memref<1x32xf32, #tpu.memory_space<vmem>>, %arg6: memref<1x32xf32, #tpu.memory_space<vmem>>, %arg7: memref<64x32xf32, #tpu.memory_space<vmem>>) attributes {dimension_semantics = [#tpu.dimension_semantics<parallel>], iteration_bounds = array<i64: 1>, scalar_prefetch = 0 : i64, scratch_operands = 0 : i64, tpu.core_type = #tpu.core_type<tc>, window_params = [{transform_indices = @transform_0, window_bounds = array<i64: 64, 32>}, {pipeline_mode = #tpu.pipeline_mode<synchronous>, transform_indices = @transform_1, window_bounds = array<i64: 32, 32>}, {pipeline_mode = #tpu.pipeline_mode<synchronous>, transform_indices = @transform_2, window_bounds = array<i64: 1, 32>}, {transform_indices = @transform_3, window_bounds = array<i64: 64, 32>}, {pipeline_mode = #tpu.pipeline_mode<synchronous>, transform_indices = @transform_4, window_bounds = array<i64: 1, 32>}, {pipeline_mode = #tpu.pipeline_mode<synchronous>, transform_indices = @transform_5, window_bounds = array<i64: 1, 32>}, {transform_indices = @transform_6, window_bounds = array<i64: 64, 32>}]} {
    %c0 = arith.constant 0 : index
    %c0_0 = arith.constant 0 : index
    %0 = vector.load %arg1[%c0, %c0_0] : memref<64x32xf32, #tpu.memory_space<vmem>>, vector<64x32xf32>
    %1 = arith.truncf %0 : vector<64x32xf32> to vector<64x32xbf16>
    %c0_1 = arith.constant 0 : index
    %c0_2 = arith.constant 0 : index
    %2 = vector.load %arg2[%c0_1, %c0_2] : memref<32x32xbf16, #tpu.memory_space<vmem>>, vector<32x32xbf16>
    %cst = arith.constant dense<0.000000e+00> : vector<64x32xf32>
    %3 = tpu.matmul %1, %2, %cst {dimension_numbers = #tpu.dot_dimension_numbers<[1], [0], [0], [1], [0, 0, 1, 1], [], []>} : vector<64x32xbf16>, vector<32x32xbf16>, vector<64x32xf32> -> vector<64x32xf32>
    %c0_3 = arith.constant 0 : index
    %c0_4 = arith.constant 0 : index
    %4 = vector.load %arg3[%c0_3, %c0_4] : memref<1x32xf32, #tpu.memory_space<vmem>>, vector<1x32xf32>
    %5 = vector.broadcast %4 : vector<1x32xf32> to vector<64x32xf32>
    %6 = arith.addf %3, %5 : vector<64x32xf32>
    %c0_5 = arith.constant 0 : index
    %c0_6 = arith.constant 0 : index
    %7 = vector.load %arg4[%c0_5, %c0_6] : memref<64x32xf32, #tpu.memory_space<vmem>>, vector<64x32xf32>
    %8 = arith.addf %6, %7 : vector<64x32xf32>
    %cst_7 = arith.constant dense<0.000000e+00> : vector<64xf32>
    %9 = vector.multi_reduction <add>, %8, %cst_7 [1] : vector<64x32xf32> to vector<64xf32>
    %10 = vector.shape_cast %9 : vector<64xf32> to vector<64x1xf32>
    %cst_8 = arith.constant 3.200000e+01 : f32
    %11 = vector.broadcast %cst_8 : f32 to vector<64x1xf32>
    %12 = arith.divf %10, %11 : vector<64x1xf32>
    %13 = vector.broadcast %12 : vector<64x1xf32> to vector<64x32xf32>
    %14 = arith.subf %8, %13 : vector<64x32xf32>
    %15 = arith.mulf %14, %14 : vector<64x32xf32>
    %cst_9 = arith.constant dense<0.000000e+00> : vector<64xf32>
    %16 = vector.multi_reduction <add>, %15, %cst_9 [1] : vector<64x32xf32> to vector<64xf32>
    %17 = vector.shape_cast %16 : vector<64xf32> to vector<64x1xf32>
    %cst_10 = arith.constant 3.200000e+01 : f32
    %18 = vector.broadcast %cst_10 : f32 to vector<64x1xf32>
    %19 = arith.divf %17, %18 : vector<64x1xf32>
    %20 = vector.broadcast %12 : vector<64x1xf32> to vector<64x32xf32>
    %21 = arith.subf %8, %20 : vector<64x32xf32>
    %cst_11 = arith.constant 9.99999974E-6 : f32
    %22 = vector.broadcast %cst_11 : f32 to vector<64x1xf32>
    %23 = arith.addf %19, %22 : vector<64x1xf32>
    %24 = math.rsqrt %23 : vector<64x1xf32>
    %25 = vector.broadcast %24 : vector<64x1xf32> to vector<64x32xf32>
    %26 = arith.mulf %21, %25 : vector<64x32xf32>
    %c0_12 = arith.constant 0 : index
    %c0_13 = arith.constant 0 : index
    %27 = vector.load %arg5[%c0_12, %c0_13] : memref<1x32xf32, #tpu.memory_space<vmem>>, vector<1x32xf32>
    %28 = vector.broadcast %27 : vector<1x32xf32> to vector<64x32xf32>
    %29 = arith.mulf %26, %28 : vector<64x32xf32>
    %c0_14 = arith.constant 0 : index
    %c0_15 = arith.constant 0 : index
    %30 = vector.load %arg6[%c0_14, %c0_15] : memref<1x32xf32, #tpu.memory_space<vmem>>, vector<1x32xf32>
    %31 = vector.broadcast %30 : vector<1x32xf32> to vector<64x32xf32>
    %32 = arith.addf %29, %31 : vector<64x32xf32>
    %c0_16 = arith.constant 0 : index
    %c0_17 = arith.constant 0 : index
    %33 = vector.load %arg7[%c0_16, %c0_17] : memref<64x32xf32, #tpu.memory_space<vmem>>, vector<64x32xf32>
    tpu.vector_store %arg7[%c0_16, %c0_17], %32 {strides = array<i32>} : memref<64x32xf32, #tpu.memory_space<vmem>>, vector<64x32xf32>,
    return
  }
  func.func @transform_0(%arg0: i32) -> (i32, i32) {
    %c0_i32 = arith.constant 0 : i32
    %c0_i32_0 = arith.constant 0 : i32
    return %arg0, %c0_i32 : i32, i32
  }
  func.func @transform_1(%arg0: i32) -> (i32, i32) {
    %c0_i32 = arith.constant 0 : i32
    %c0_i32_0 = arith.constant 0 : i32
    %c0_i32_1 = arith.constant 0 : i32
    return %c0_i32, %c0_i32_0 : i32, i32
  }
  func.func @transform_2(%arg0: i32) -> (i32, i32) {
    %c0_i32 = arith.constant 0 : i32
    %c0_i32_0 = arith.constant 0 : i32
    %c0_i32_1 = arith.constant 0 : i32
    return %c0_i32, %c0_i32_0 : i32, i32
  }
  func.func @transform_3(%arg0: i32) -> (i32, i32) {
    %c0_i32 = arith.constant 0 : i32
    %c0_i32_0 = arith.constant 0 : i32
    return %arg0, %c0_i32 : i32, i32
  }
  func.func @transform_4(%arg0: i32) -> (i32, i32) {
    %c0_i32 = arith.constant 0 : i32
    %c0_i32_0 = arith.constant 0 : i32
    %c0_i32_1 = arith.constant 0 : i32
    return %c0_i32, %c0_i32_0 : i32, i32
  }
  func.func @transform_5(%arg0: i32) -> (i32, i32) {
    %c0_i32 = arith.constant 0 : i32
    %c0_i32_0 = arith.constant 0 : i32
    %c0_i32_1 = arith.constant 0 : i32
    return %c0_i32, %c0_i32_0 : i32, i32
  }
  func.func @transform_6(%arg0: i32) -> (i32, i32) {
    %c0_i32 = arith.constant 0 : i32
    %c0_i32_0 = arith.constant 0 : i32
    return %arg0, %c0_i32 : i32, i32
  }
}

module attributes {stable_mosaic.version = 11 : i64} {
  func.func @_linear_kernel(%arg0: i32, %arg1: i32, %arg2: memref<64x32xf32, #tpu.memory_space<vmem>>, %arg3: memref<32x64xbf16, #tpu.memory_space<vmem>>, %arg4: memref<1x64xf32, #tpu.memory_space<vmem>>, %arg5: memref<64x64xf32, #tpu.memory_space<vmem>>) attributes {dimension_semantics = [#tpu.dimension_semantics<parallel>, #tpu.dimension_semantics<parallel>], iteration_bounds = array<i64: 1, 1>, scalar_prefetch = 0 : i64, scratch_operands = 0 : i64, tpu.core_type = #tpu.core_type<tc>, window_params = [{transform_indices = @transform_0, window_bounds = array<i64: 64, 32>}, {transform_indices = @transform_1, window_bounds = array<i64: 32, 64>}, {transform_indices = @transform_2, window_bounds = array<i64: 1, 64>}, {transform_indices = @transform_3, window_bounds = array<i64: 64, 64>}]} {
    %c0 = arith.constant 0 : index
    %c0_0 = arith.constant 0 : index
    %0 = vector.load %arg2[%c0, %c0_0] : memref<64x32xf32, #tpu.memory_space<vmem>>, vector<64x32xf32>
    %1 = arith.truncf %0 : vector<64x32xf32> to vector<64x32xbf16>
    %c0_1 = arith.constant 0 : index
    %c0_2 = arith.constant 0 : index
    %2 = vector.load %arg3[%c0_1, %c0_2] : memref<32x64xbf16, #tpu.memory_space<vmem>>, vector<32x64xbf16>
    %cst = arith.constant dense<0.000000e+00> : vector<64x64xf32>
    %3 = tpu.matmul %1, %2, %cst {dimension_numbers = #tpu.dot_dimension_numbers<[1], [0], [0], [1], [0, 0, 1, 1], [], []>} : vector<64x32xbf16>, vector<32x64xbf16>, vector<64x64xf32> -> vector<64x64xf32>
    %c0_3 = arith.constant 0 : index
    %c0_4 = arith.constant 0 : index
    %4 = vector.load %arg4[%c0_3, %c0_4] : memref<1x64xf32, #tpu.memory_space<vmem>>, vector<1x64xf32>
    %5 = vector.broadcast %4 : vector<1x64xf32> to vector<64x64xf32>
    %6 = arith.addf %3, %5 : vector<64x64xf32>
    %7 = arith.mulf %6, %6 : vector<64x64xf32>
    %8 = arith.mulf %6, %7 : vector<64x64xf32>
    %cst_5 = arith.constant 4.471500e-02 : f32
    %9 = vector.broadcast %cst_5 : f32 to vector<64x64xf32>
    %10 = arith.mulf %9, %8 : vector<64x64xf32>
    %11 = arith.addf %6, %10 : vector<64x64xf32>
    %cst_6 = arith.constant 0.797884583 : f32
    %12 = vector.broadcast %cst_6 : f32 to vector<64x64xf32>
    %13 = arith.mulf %12, %11 : vector<64x64xf32>
    %14 = math.tanh %13 : vector<64x64xf32>
    %cst_7 = arith.constant 1.000000e+00 : f32
    %15 = vector.broadcast %cst_7 : f32 to vector<64x64xf32>
    %16 = arith.addf %15, %14 : vector<64x64xf32>
    %cst_8 = arith.constant 5.000000e-01 : f32
    %17 = vector.broadcast %cst_8 : f32 to vector<64x64xf32>
    %18 = arith.mulf %17, %16 : vector<64x64xf32>
    %19 = arith.mulf %6, %18 : vector<64x64xf32>
    %c0_9 = arith.constant 0 : index
    %c0_10 = arith.constant 0 : index
    %20 = vector.load %arg5[%c0_9, %c0_10] : memref<64x64xf32, #tpu.memory_space<vmem>>, vector<64x64xf32>
    tpu.vector_store %arg5[%c0_9, %c0_10], %19 {strides = array<i32>} : memref<64x64xf32, #tpu.memory_space<vmem>>, vector<64x64xf32>,
    return
  }
  func.func @transform_0(%arg0: i32, %arg1: i32) -> (i32, i32) {
    %c0_i32 = arith.constant 0 : i32
    %c0_i32_0 = arith.constant 0 : i32
    return %arg0, %c0_i32 : i32, i32
  }
  func.func @transform_1(%arg0: i32, %arg1: i32) -> (i32, i32) {
    %c0_i32 = arith.constant 0 : i32
    %c0_i32_0 = arith.constant 0 : i32
    return %c0_i32, %arg1 : i32, i32
  }
  func.func @transform_2(%arg0: i32, %arg1: i32) -> (i32, i32) {
    %c0_i32 = arith.constant 0 : i32
    %c0_i32_0 = arith.constant 0 : i32
    return %c0_i32, %arg1 : i32, i32
  }
  func.func @transform_3(%arg0: i32, %arg1: i32) -> (i32, i32) {
    %c0_i32 = arith.constant 0 : i32
    return %arg0, %arg1 : i32, i32
  }
}

module attributes {stable_mosaic.version = 11 : i64} {
  func.func @_pool_norm_kernel(%arg0: i32, %arg1: memref<8x8x32xf32, #tpu.memory_space<vmem>>, %arg2: memref<8x8x1xf32, #tpu.memory_space<vmem>>, %arg3: memref<8x32xf32, #tpu.memory_space<vmem>>) attributes {dimension_semantics = [#tpu.dimension_semantics<parallel>], iteration_bounds = array<i64: 1>, scalar_prefetch = 0 : i64, scratch_operands = 0 : i64, tpu.core_type = #tpu.core_type<tc>, window_params = [{transform_indices = @transform_0, window_bounds = array<i64: 8, 8, 32>}, {transform_indices = @transform_1, window_bounds = array<i64: 8, 8, 1>}, {transform_indices = @transform_2, window_bounds = array<i64: 8, 32>}]} {
    %c0 = arith.constant 0 : index
    %c0_0 = arith.constant 0 : index
    %c0_1 = arith.constant 0 : index
    %0 = vector.load %arg1[%c0, %c0_0, %c0_1] : memref<8x8x32xf32, #tpu.memory_space<vmem>>, vector<8x8x32xf32>
    %c0_2 = arith.constant 0 : index
    %c0_3 = arith.constant 0 : index
    %c0_4 = arith.constant 0 : index
    %1 = vector.load %arg2[%c0_2, %c0_3, %c0_4] : memref<8x8x1xf32, #tpu.memory_space<vmem>>, vector<8x8x1xf32>
    %2 = vector.broadcast %1 : vector<8x8x1xf32> to vector<8x8x32xf32>
    %3 = arith.mulf %0, %2 : vector<8x8x32xf32>
    %cst = arith.constant dense<0.000000e+00> : vector<8x32xf32>
    %4 = vector.multi_reduction <add>, %3, %cst [1] : vector<8x8x32xf32> to vector<8x32xf32>
    %cst_5 = arith.constant dense<0.000000e+00> : vector<8x1xf32>
    %5 = vector.multi_reduction <add>, %1, %cst_5 [1] : vector<8x8x1xf32> to vector<8x1xf32>
    %cst_6 = arith.constant 9.99999971E-10 : f32
    %6 = vector.broadcast %cst_6 : f32 to vector<8x1xf32>
    %7 = arith.maximumf %5, %6 : vector<8x1xf32>
    %8 = vector.broadcast %7 : vector<8x1xf32> to vector<8x32xf32>
    %9 = arith.divf %4, %8 : vector<8x32xf32>
    %10 = arith.mulf %9, %9 : vector<8x32xf32>
    %cst_7 = arith.constant dense<0.000000e+00> : vector<8xf32>
    %11 = vector.multi_reduction <add>, %10, %cst_7 [1] : vector<8x32xf32> to vector<8xf32>
    %12 = vector.shape_cast %11 : vector<8xf32> to vector<8x1xf32>
    %cst_8 = arith.constant 1.000000e-24 : f32
    %13 = vector.broadcast %cst_8 : f32 to vector<8x1xf32>
    %14 = arith.maximumf %12, %13 : vector<8x1xf32>
    %15 = math.rsqrt %14 : vector<8x1xf32>
    %16 = vector.broadcast %15 : vector<8x1xf32> to vector<8x32xf32>
    %17 = arith.mulf %9, %16 : vector<8x32xf32>
    %c0_9 = arith.constant 0 : index
    %c0_10 = arith.constant 0 : index
    %18 = vector.load %arg3[%c0_9, %c0_10] : memref<8x32xf32, #tpu.memory_space<vmem>>, vector<8x32xf32>
    tpu.vector_store %arg3[%c0_9, %c0_10], %17 {strides = array<i32>} : memref<8x32xf32, #tpu.memory_space<vmem>>, vector<8x32xf32>,
    return
  }
  func.func @transform_0(%arg0: i32) -> (i32, i32, i32) {
    %c0_i32 = arith.constant 0 : i32
    %c0_i32_0 = arith.constant 0 : i32
    %c0_i32_1 = arith.constant 0 : i32
    return %arg0, %c0_i32, %c0_i32_0 : i32, i32, i32
  }
  func.func @transform_1(%arg0: i32) -> (i32, i32, i32) {
    %c0_i32 = arith.constant 0 : i32
    %c0_i32_0 = arith.constant 0 : i32
    %c0_i32_1 = arith.constant 0 : i32
    return %arg0, %c0_i32, %c0_i32_0 : i32, i32, i32
  }
  func.func @transform_2(%arg0: i32) -> (i32, i32) {
    %c0_i32 = arith.constant 0 : i32
    %c0_i32_0 = arith.constant 0 : i32
    return %arg0, %c0_i32 : i32, i32
  }
}

module attributes {stable_mosaic.version = 11 : i64} {
  func.func @_linear_add_ln_kernel(%arg0: i32, %arg1: memref<64x64xf32, #tpu.memory_space<vmem>>, %arg2: memref<64x32xbf16, #tpu.memory_space<vmem>>, %arg3: memref<1x32xf32, #tpu.memory_space<vmem>>, %arg4: memref<64x32xf32, #tpu.memory_space<vmem>>, %arg5: memref<1x32xf32, #tpu.memory_space<vmem>>, %arg6: memref<1x32xf32, #tpu.memory_space<vmem>>, %arg7: memref<64x32xf32, #tpu.memory_space<vmem>>) attributes {dimension_semantics = [#tpu.dimension_semantics<parallel>], iteration_bounds = array<i64: 1>, scalar_prefetch = 0 : i64, scratch_operands = 0 : i64, tpu.core_type = #tpu.core_type<tc>, window_params = [{transform_indices = @transform_0, window_bounds = array<i64: 64, 64>}, {pipeline_mode = #tpu.pipeline_mode<synchronous>, transform_indices = @transform_1, window_bounds = array<i64: 64, 32>}, {pipeline_mode = #tpu.pipeline_mode<synchronous>, transform_indices = @transform_2, window_bounds = array<i64: 1, 32>}, {transform_indices = @transform_3, window_bounds = array<i64: 64, 32>}, {pipeline_mode = #tpu.pipeline_mode<synchronous>, transform_indices = @transform_4, window_bounds = array<i64: 1, 32>}, {pipeline_mode = #tpu.pipeline_mode<synchronous>, transform_indices = @transform_5, window_bounds = array<i64: 1, 32>}, {transform_indices = @transform_6, window_bounds = array<i64: 64, 32>}]} {
    %c0 = arith.constant 0 : index
    %c0_0 = arith.constant 0 : index
    %0 = vector.load %arg1[%c0, %c0_0] : memref<64x64xf32, #tpu.memory_space<vmem>>, vector<64x64xf32>
    %1 = arith.truncf %0 : vector<64x64xf32> to vector<64x64xbf16>
    %c0_1 = arith.constant 0 : index
    %c0_2 = arith.constant 0 : index
    %2 = vector.load %arg2[%c0_1, %c0_2] : memref<64x32xbf16, #tpu.memory_space<vmem>>, vector<64x32xbf16>
    %cst = arith.constant dense<0.000000e+00> : vector<64x32xf32>
    %3 = tpu.matmul %1, %2, %cst {dimension_numbers = #tpu.dot_dimension_numbers<[1], [0], [0], [1], [0, 0, 1, 1], [], []>} : vector<64x64xbf16>, vector<64x32xbf16>, vector<64x32xf32> -> vector<64x32xf32>
    %c0_3 = arith.constant 0 : index
    %c0_4 = arith.constant 0 : index
    %4 = vector.load %arg3[%c0_3, %c0_4] : memref<1x32xf32, #tpu.memory_space<vmem>>, vector<1x32xf32>
    %5 = vector.broadcast %4 : vector<1x32xf32> to vector<64x32xf32>
    %6 = arith.addf %3, %5 : vector<64x32xf32>
    %c0_5 = arith.constant 0 : index
    %c0_6 = arith.constant 0 : index
    %7 = vector.load %arg4[%c0_5, %c0_6] : memref<64x32xf32, #tpu.memory_space<vmem>>, vector<64x32xf32>
    %8 = arith.addf %6, %7 : vector<64x32xf32>
    %cst_7 = arith.constant dense<0.000000e+00> : vector<64xf32>
    %9 = vector.multi_reduction <add>, %8, %cst_7 [1] : vector<64x32xf32> to vector<64xf32>
    %10 = vector.shape_cast %9 : vector<64xf32> to vector<64x1xf32>
    %cst_8 = arith.constant 3.200000e+01 : f32
    %11 = vector.broadcast %cst_8 : f32 to vector<64x1xf32>
    %12 = arith.divf %10, %11 : vector<64x1xf32>
    %13 = vector.broadcast %12 : vector<64x1xf32> to vector<64x32xf32>
    %14 = arith.subf %8, %13 : vector<64x32xf32>
    %15 = arith.mulf %14, %14 : vector<64x32xf32>
    %cst_9 = arith.constant dense<0.000000e+00> : vector<64xf32>
    %16 = vector.multi_reduction <add>, %15, %cst_9 [1] : vector<64x32xf32> to vector<64xf32>
    %17 = vector.shape_cast %16 : vector<64xf32> to vector<64x1xf32>
    %cst_10 = arith.constant 3.200000e+01 : f32
    %18 = vector.broadcast %cst_10 : f32 to vector<64x1xf32>
    %19 = arith.divf %17, %18 : vector<64x1xf32>
    %20 = vector.broadcast %12 : vector<64x1xf32> to vector<64x32xf32>
    %21 = arith.subf %8, %20 : vector<64x32xf32>
    %cst_11 = arith.constant 9.99999974E-6 : f32
    %22 = vector.broadcast %cst_11 : f32 to vector<64x1xf32>
    %23 = arith.addf %19, %22 : vector<64x1xf32>
    %24 = math.rsqrt %23 : vector<64x1xf32>
    %25 = vector.broadcast %24 : vector<64x1xf32> to vector<64x32xf32>
    %26 = arith.mulf %21, %25 : vector<64x32xf32>
    %c0_12 = arith.constant 0 : index
    %c0_13 = arith.constant 0 : index
    %27 = vector.load %arg5[%c0_12, %c0_13] : memref<1x32xf32, #tpu.memory_space<vmem>>, vector<1x32xf32>
    %28 = vector.broadcast %27 : vector<1x32xf32> to vector<64x32xf32>
    %29 = arith.mulf %26, %28 : vector<64x32xf32>
    %c0_14 = arith.constant 0 : index
    %c0_15 = arith.constant 0 : index
    %30 = vector.load %arg6[%c0_14, %c0_15] : memref<1x32xf32, #tpu.memory_space<vmem>>, vector<1x32xf32>
    %31 = vector.broadcast %30 : vector<1x32xf32> to vector<64x32xf32>
    %32 = arith.addf %29, %31 : vector<64x32xf32>
    %c0_16 = arith.constant 0 : index
    %c0_17 = arith.constant 0 : index
    %33 = vector.load %arg7[%c0_16, %c0_17] : memref<64x32xf32, #tpu.memory_space<vmem>>, vector<64x32xf32>
    tpu.vector_store %arg7[%c0_16, %c0_17], %32 {strides = array<i32>} : memref<64x32xf32, #tpu.memory_space<vmem>>, vector<64x32xf32>,
    return
  }
  func.func @transform_0(%arg0: i32) -> (i32, i32) {
    %c0_i32 = arith.constant 0 : i32
    %c0_i32_0 = arith.constant 0 : i32
    return %arg0, %c0_i32 : i32, i32
  }
  func.func @transform_1(%arg0: i32) -> (i32, i32) {
    %c0_i32 = arith.constant 0 : i32
    %c0_i32_0 = arith.constant 0 : i32
    %c0_i32_1 = arith.constant 0 : i32
    return %c0_i32, %c0_i32_0 : i32, i32
  }
  func.func @transform_2(%arg0: i32) -> (i32, i32) {
    %c0_i32 = arith.constant 0 : i32
    %c0_i32_0 = arith.constant 0 : i32
    %c0_i32_1 = arith.constant 0 : i32
    return %c0_i32, %c0_i32_0 : i32, i32
  }
  func.func @transform_3(%arg0: i32) -> (i32, i32) {
    %c0_i32 = arith.constant 0 : i32
    %c0_i32_0 = arith.constant 0 : i32
    return %arg0, %c0_i32 : i32, i32
  }
  func.func @transform_4(%arg0: i32) -> (i32, i32) {
    %c0_i32 = arith.constant 0 : i32
    %c0_i32_0 = arith.constant 0 : i32
    %c0_i32_1 = arith.constant 0 : i32
    return %c0_i32, %c0_i32_0 : i32, i32
  }
  func.func @transform_5(%arg0: i32) -> (i32, i32) {
    %c0_i32 = arith.constant 0 : i32
    %c0_i32_0 = arith.constant 0 : i32
    %c0_i32_1 = arith.constant 0 : i32
    return %c0_i32, %c0_i32_0 : i32, i32
  }
  func.func @transform_6(%arg0: i32) -> (i32, i32) {
    %c0_i32 = arith.constant 0 : i32
    %c0_i32_0 = arith.constant 0 : i32
    return %arg0, %c0_i32 : i32, i32
  }
}

module attributes {stable_mosaic.version = 11 : i64} {
  func.func @_link_head_kernel(%arg0: i32, %arg1: memref<8x32xf32, #tpu.memory_space<vmem>>, %arg2: memref<8x32xf32, #tpu.memory_space<vmem>>, %arg3: memref<32x32xbf16, #tpu.memory_space<vmem>>, %arg4: memref<1x32xf32, #tpu.memory_space<vmem>>, %arg5: memref<1x32xf32, #tpu.memory_space<vmem>>, %arg6: memref<1x1xf32, #tpu.memory_space<vmem>>, %arg7: memref<8x1xf32, #tpu.memory_space<vmem>>) attributes {dimension_semantics = [#tpu.dimension_semantics<parallel>], iteration_bounds = array<i64: 1>, scalar_prefetch = 0 : i64, scratch_operands = 0 : i64, tpu.core_type = #tpu.core_type<tc>, window_params = [{transform_indices = @transform_0, window_bounds = array<i64: 8, 32>}, {transform_indices = @transform_1, window_bounds = array<i64: 8, 32>}, {pipeline_mode = #tpu.pipeline_mode<synchronous>, transform_indices = @transform_2, window_bounds = array<i64: 32, 32>}, {pipeline_mode = #tpu.pipeline_mode<synchronous>, transform_indices = @transform_3, window_bounds = array<i64: 1, 32>}, {pipeline_mode = #tpu.pipeline_mode<synchronous>, transform_indices = @transform_4, window_bounds = array<i64: 1, 32>}, {pipeline_mode = #tpu.pipeline_mode<synchronous>, transform_indices = @transform_5, window_bounds = array<i64: 1, 1>}, {transform_indices = @transform_6, window_bounds = array<i64: 8, 1>}]} {
    %c0 = arith.constant 0 : index
    %c0_0 = arith.constant 0 : index
    %0 = vector.load %arg1[%c0, %c0_0] : memref<8x32xf32, #tpu.memory_space<vmem>>, vector<8x32xf32>
    %c0_1 = arith.constant 0 : index
    %c0_2 = arith.constant 0 : index
    %1 = vector.load %arg2[%c0_1, %c0_2] : memref<8x32xf32, #tpu.memory_space<vmem>>, vector<8x32xf32>
    %2 = arith.mulf %0, %1 : vector<8x32xf32>
    %3 = arith.truncf %2 : vector<8x32xf32> to vector<8x32xbf16>
    %c0_3 = arith.constant 0 : index
    %c0_4 = arith.constant 0 : index
    %4 = vector.load %arg3[%c0_3, %c0_4] : memref<32x32xbf16, #tpu.memory_space<vmem>>, vector<32x32xbf16>
    %cst = arith.constant dense<0.000000e+00> : vector<8x32xf32>
    %5 = tpu.matmul %3, %4, %cst {dimension_numbers = #tpu.dot_dimension_numbers<[1], [0], [0], [1], [0, 0, 1, 1], [], []>} : vector<8x32xbf16>, vector<32x32xbf16>, vector<8x32xf32> -> vector<8x32xf32>
    %c0_5 = arith.constant 0 : index
    %c0_6 = arith.constant 0 : index
    %6 = vector.load %arg4[%c0_5, %c0_6] : memref<1x32xf32, #tpu.memory_space<vmem>>, vector<1x32xf32>
    %7 = vector.broadcast %6 : vector<1x32xf32> to vector<8x32xf32>
    %8 = arith.addf %5, %7 : vector<8x32xf32>
    %9 = math.tanh %8 : vector<8x32xf32>
    %c0_7 = arith.constant 0 : index
    %c0_8 = arith.constant 0 : index
    %10 = vector.load %arg5[%c0_7, %c0_8] : memref<1x32xf32, #tpu.memory_space<vmem>>, vector<1x32xf32>
    %11 = vector.broadcast %10 : vector<1x32xf32> to vector<8x32xf32>
    %12 = arith.mulf %9, %11 : vector<8x32xf32>
    %cst_9 = arith.constant dense<0.000000e+00> : vector<8xf32>
    %13 = vector.multi_reduction <add>, %12, %cst_9 [1] : vector<8x32xf32> to vector<8xf32>
    %14 = vector.shape_cast %13 : vector<8xf32> to vector<8x1xf32>
    %c0_10 = arith.constant 0 : index
    %c0_11 = arith.constant 0 : index
    %15 = vector.load %arg6[%c0_10, %c0_11] : memref<1x1xf32, #tpu.memory_space<vmem>>, vector<1x1xf32>
    %16 = vector.broadcast %15 : vector<1x1xf32> to vector<8x1xf32>
    %17 = arith.addf %14, %16 : vector<8x1xf32>
    %18 = arith.negf %17 : vector<8x1xf32>
    %19 = math.exp %18 : vector<8x1xf32>
    %cst_12 = arith.constant 1.000000e+00 : f32
    %20 = vector.broadcast %cst_12 : f32 to vector<8x1xf32>
    %21 = arith.addf %20, %19 : vector<8x1xf32>
    %22 = arith.divf %20, %21 : vector<8x1xf32>
    %c0_13 = arith.constant 0 : index
    %c0_14 = arith.constant 0 : index
    %23 = vector.load %arg7[%c0_13, %c0_14] : memref<8x1xf32, #tpu.memory_space<vmem>>, vector<8x1xf32>
    tpu.vector_store %arg7[%c0_13, %c0_14], %22 {strides = array<i32>} : memref<8x1xf32, #tpu.memory_space<vmem>>, vector<8x1xf32>,
    return
  }
  func.func @transform_0(%arg0: i32) -> (i32, i32) {
    %c0_i32 = arith.constant 0 : i32
    %c0_i32_0 = arith.constant 0 : i32
    return %arg0, %c0_i32 : i32, i32
  }
  func.func @transform_1(%arg0: i32) -> (i32, i32) {
    %c0_i32 = arith.constant 0 : i32
    %c0_i32_0 = arith.constant 0 : i32
    return %arg0, %c0_i32 : i32, i32
  }
  func.func @transform_2(%arg0: i32) -> (i32, i32) {
    %c0_i32 = arith.constant 0 : i32
    %c0_i32_0 = arith.constant 0 : i32
    %c0_i32_1 = arith.constant 0 : i32
    return %c0_i32, %c0_i32_0 : i32, i32
  }
  func.func @transform_3(%arg0: i32) -> (i32, i32) {
    %c0_i32 = arith.constant 0 : i32
    %c0_i32_0 = arith.constant 0 : i32
    %c0_i32_1 = arith.constant 0 : i32
    return %c0_i32, %c0_i32_0 : i32, i32
  }
  func.func @transform_4(%arg0: i32) -> (i32, i32) {
    %c0_i32 = arith.constant 0 : i32
    %c0_i32_0 = arith.constant 0 : i32
    %c0_i32_1 = arith.constant 0 : i32
    return %c0_i32, %c0_i32_0 : i32, i32
  }
  func.func @transform_5(%arg0: i32) -> (i32, i32) {
    %c0_i32 = arith.constant 0 : i32
    %c0_i32_0 = arith.constant 0 : i32
    %c0_i32_1 = arith.constant 0 : i32
    return %c0_i32, %c0_i32_0 : i32, i32
  }
  func.func @transform_6(%arg0: i32) -> (i32, i32) {
    %c0_i32 = arith.constant 0 : i32
    %c0_i32_0 = arith.constant 0 : i32
    return %arg0, %c0_i32 : i32, i32
  }
}

</mosaic_0001>

<llo_original>
// kernel: _lambda_.15
$region0: #{_lambda_.15}
  #allocation0 [shape = 'u32[]', space=smem, size = 0x4, offset = 0x4, fixed_abs, tag = 'smem constant byte address 0x4 - core index']
  #allocation1 [shape = 'u32[72,128]{1,0:T(1,128)}', space=vmem, size = 0x9000, scoped, tag = 'internal scratch']
  %s0 = inlined_call_operand.vmem [shape: f32[64,32], index: 0, kind: input, shape index: {}]
  %s1 = inlined_call_operand.vmem [shape: bf16[32,96], index: 1, kind: input, shape index: {}]
  %s2 = inlined_call_operand.vmem [shape: f32[1,96], index: 2, kind: input, shape index: {}]
  %s3 = inlined_call_operand.vmem [shape: f32[64,96], index: 3, kind: output, shape index: {}]
  %s4 = sld [smem:[#allocation0]]
  $region22: #{_lambda_.15} parent=0
    _
  %s6 = ssub.s32 1, %s4
  %s7 = scalar_select 0, %s6, %s4
  // Predicated region
  $region2: #{_lambda_.15} parent=0 // pred_check
    _
  $region3: #{_lambda_.15} parent=0 // pred_check_branch
    %9 = sbr.rel (0) target = $region5
  $region4: #{_lambda_.15} parent=0 // pred_region
    _
  $region5: #{_lambda_.15} parent=0 // pred_fallthru
    _
  // Predicated region
  $region6: #{_lambda_.15} parent=0 // pred_check
    _
  $region7: #{_lambda_.15} parent=0 // pred_check_branch
    %11 = sbr.rel (0) target = $region9
  $region8: #{_lambda_.15} parent=0 // pred_region
    _
  $region9: #{_lambda_.15} parent=0 // pred_fallthru
    _
  // Predicated region
  $region10: #{_lambda_.15} parent=0 // pred_check
    _
  $region11: #{_lambda_.15} parent=0 // pred_check_branch
    %13 = sbr.rel (0) target = $region13
  $region12: #{_lambda_.15} parent=0 // pred_region
    _
  $region13: #{_lambda_.15} parent=0 // pred_fallthru
    _
  %v15 = vld [vmem:[%s0] sm:$0xff]
  %v16 = vld [vmem:[%s0 + $0x8] sm:$0xff]
  %v17 = vld [vmem:[%s0 + $0x10] sm:$0xff]
  %v18 = vld [vmem:[%s0 + $0x18] sm:$0xff]
  %v19 = vld [vmem:[%s0 + $0x20] sm:$0xff]
  %v20 = vld [vmem:[%s0 + $0x28] sm:$0xff]
  %v21 = vld [vmem:[%s0 + $0x30] sm:$0xff]
  %v22 = vld [vmem:[%s0 + $0x38] sm:$0xff]
  %v23 = vpack.c.bf16 %v16, %v15
  %v24 = vpack.c.bf16 %v18, %v17
  %v25 = vpack.c.bf16 %v20, %v19
  %v26 = vpack.c.bf16 %v22, %v21
  %v27 = vld [vmem:[%s1] sm:$0xf]
  %v28 = vld [vmem:[%s1 + $0x4] sm:$0xf]
  %v29 = vld [vmem:[%s1 + $0x8] sm:$0xf]
  %v30 = vld [vmem:[%s1 + $0xc] sm:$0xf]
  %v31 = vld [vmem:[%s2] sm:$0x1]
  %v33 = vperm.slane %v31, 0
  %v39 = vunpack.c.l.b16 %v27
  %v40 = vunpack.c.l.b16 %v28
  %v41 = vunpack.c.l.b16 %v29
  %v42 = vunpack.c.l.b16 %v30
  %v43 = vpack.c.b16 %v40, %v39
  %v44 = vpack.c.b16 %v42, %v41
  %vm47 = vcmask 261120
  %v49 = vsel %vm47, %v23, 0
  %v52 = vsel %vm47, %v24, 0
  %v55 = vsel %vm47, %v25, 0
  %v58 = vsel %vm47, %v26, 0
  %60 = vmatpush.bf16.msra.mxu0 0
  %61 = vmatpush.bf16.msra.mxu0 0
  %62 = vmatpush.bf16.msra.mxu0 0
  %63 = vmatpush.bf16.msra.mxu0 0
  %64 = vmatpush.bf16.msra.mxu0 0
  %65 = vmatpush.bf16.msra.mxu0 0
  %66 = vmatpush.bf16.msra.mxu0 %v44
  %67 = vmatpush.bf16.msra.mxu0 %v43
  %68 = vmatmul.bf16.gmra.mxu0 %v49
  %v69 = vpop.f32.mrf.mxu0
  %v70 = vadd.f32 %v33, %v69
  %v71 = vpop.f32.mrf.mxu0
  %v72 = vadd.f32 %v33, %v71
  %73 = vmatmul.bf16.gmra.mxu0 %v52
  %v74 = vpop.f32.mrf.mxu0
  %v75 = vadd.f32 %v33, %v74
  %v76 = vpop.f32.mrf.mxu0
  %v77 = vadd.f32 %v33, %v76
  %78 = vmatmul.bf16.gmra.mxu0 %v55
  %v79 = vpop.f32.mrf.mxu0
  %v80 = vadd.f32 %v33, %v79
  %v81 = vpop.f32.mrf.mxu0
  %v82 = vadd.f32 %v33, %v81
  %83 = vmatmul.bf16.gmra.mxu0 %v58
  %v84 = vpop.f32.mrf.mxu0
  %v85 = vadd.f32 %v33, %v84
  %v86 = vpop.f32.mrf.mxu0
  %v87 = vadd.f32 %v33, %v86
  %88 = vdwg.mxu0
  %vm89 = vcmask 785408
  %90 = vst.msk [vmem:[%s3] sm:$0xff] %vm89, %v70
  %91 = vst.msk [vmem:[%s3 + $0x8] sm:$0xff] %vm89, %v72
  %92 = vst.msk [vmem:[%s3 + $0x10] sm:$0xff] %vm89, %v75
  %93 = vst.msk [vmem:[%s3 + $0x18] sm:$0xff] %vm89, %v77
  %94 = vst.msk [vmem:[%s3 + $0x20] sm:$0xff] %vm89, %v80
  %95 = vst.msk [vmem:[%s3 + $0x28] sm:$0xff] %vm89, %v82
  %96 = vst.msk [vmem:[%s3 + $0x30] sm:$0xff] %vm89, %v85
  %97 = vst.msk [vmem:[%s3 + $0x38] sm:$0xff] %vm89, %v87
  // Predicated region
  $region14: #{_lambda_.15} parent=0 // pred_check
    _
  $region15: #{_lambda_.15} parent=0 // pred_check_branch
    %99 = sbr.rel (0) target = $region17
  $region16: #{_lambda_.15} parent=0 // pred_region
    _
  $region17: #{_lambda_.15} parent=0 // pred_fallthru
    _
  // Predicated region
  $region18: #{_lambda_.15} parent=0 // pred_check
    _
  $region19: #{_lambda_.15} parent=0 // pred_check_branch
    %101 = sbr.rel (0) target = $region21
  $region20: #{_lambda_.15} parent=0 // pred_region
    _
  $region21: #{_lambda_.15} parent=0 // pred_fallthru
    _

// kernel: _lambda_.14
$region0: #{_lambda_.14}
  #allocation0 [shape = 'u32[]', space=smem, size = 0x4, offset = 0x4, fixed_abs, tag = 'smem constant byte address 0x4 - core index']
  #allocation1 [shape = 'u32[72,128]{1,0:T(1,128)}', space=vmem, size = 0x9000, scoped, tag = 'internal scratch']
  %s0 = inlined_call_operand.vmem [shape: f32[64,32], index: 0, kind: input, shape index: {}]
  %s1 = inlined_call_operand.vmem [shape: f32[1,32], index: 1, kind: input, shape index: {}]
  %s2 = inlined_call_operand.vmem [shape: f32[1,32], index: 2, kind: input, shape index: {}]
  %s3 = inlined_call_operand.vmem [shape: f32[64,32], index: 3, kind: output, shape index: {}]
  %s4 = sld [smem:[#allocation0]]
  $region22: #{_lambda_.14} parent=0
    _
  %s6 = ssub.s32 1, %s4
  %s7 = scalar_select 0, %s6, %s4
  // Predicated region
  $region2: #{_lambda_.14} parent=0 // pred_check
    _
  $region3: #{_lambda_.14} parent=0 // pred_check_branch
    %9 = sbr.rel (0) target = $region5
  $region4: #{_lambda_.14} parent=0 // pred_region
    _
  $region5: #{_lambda_.14} parent=0 // pred_fallthru
    _
  // Predicated region
  $region6: #{_lambda_.14} parent=0 // pred_check
    _
  $region7: #{_lambda_.14} parent=0 // pred_check_branch
    %11 = sbr.rel (0) target = $region9
  $region8: #{_lambda_.14} parent=0 // pred_region
    _
  $region9: #{_lambda_.14} parent=0 // pred_fallthru
    _
  // Predicated region
  $region10: #{_lambda_.14} parent=0 // pred_check
    _
  $region11: #{_lambda_.14} parent=0 // pred_check_branch
    %13 = sbr.rel (0) target = $region13
  $region12: #{_lambda_.14} parent=0 // pred_region
    _
  $region13: #{_lambda_.14} parent=0 // pred_fallthru
    _
  %v14 = vld [vmem:[%s0] sm:$0xff]
  %v15 = vld [vmem:[%s0 + $0x8] sm:$0xff]
  %v16 = vld [vmem:[%s0 + $0x10] sm:$0xff]
  %v17 = vld [vmem:[%s0 + $0x18] sm:$0xff]
  %v18 = vld [vmem:[%s0 + $0x20] sm:$0xff]
  %v19 = vld [vmem:[%s0 + $0x28] sm:$0xff]
  %v20 = vld [vmem:[%s0 + $0x30] sm:$0xff]
  %v21 = vld [vmem:[%s0 + $0x38] sm:$0xff]
  %vm22 = vcmask 261120
  %v23 = vsel %vm22, %v14, 0.0
  %24 = vadd.xlane.f32.xlu0 %v23
  %v25 = vpop.xlane.xlu0 %24
  %v26 = vsel %vm22, %v15, 0.0
  %27 = vadd.xlane.f32.xlu0 %v26
  %v28 = vpop.xlane.xlu0 %27
  %v29 = vsel %vm22, %v16, 0.0
  %30 = vadd.xlane.f32.xlu0 %v29
  %v31 = vpop.xlane.xlu0 %30
  %v32 = vsel %vm22, %v17, 0.0
  %33 = vadd.xlane.f32.xlu0 %v32
  %v34 = vpop.xlane.xlu0 %33
  %v35 = vsel %vm22, %v18, 0.0
  %36 = vadd.xlane.f32.xlu0 %v35
  %v37 = vpop.xlane.xlu0 %36
  %v38 = vsel %vm22, %v19, 0.0
  %39 = vadd.xlane.f32.xlu0 %v38
  %v40 = vpop.xlane.xlu0 %39
  %v41 = vsel %vm22, %v20, 0.0
  %42 = vadd.xlane.f32.xlu0 %v41
  %v43 = vpop.xlane.xlu0 %42
  %v44 = vsel %vm22, %v21, 0.0
  %45 = vadd.xlane.f32.xlu0 %v44
  %v46 = vpop.xlane.xlu0 %45
  %v47 = vrcp.pop 32.0
  %v48 = vmul.f32 32.0, %v47
  %v49 = vsub.f32 1.0, %v48
  %v50 = vmul.f32 %v47, %v49
  %v51 = vadd.f32 %v47, %v50
  %vm52 = vweird.f32 %v47
  %v53 = vsel %vm52, %v47, %v51
  %v54 = vmul.f32 %v25, %v53
  %v55 = vmul.f32 %v28, %v53
  %v56 = vmul.f32 %v31, %v53
  %v57 = vmul.f32 %v34, %v53
  %v58 = vmul.f32 %v37, %v53
  %v59 = vmul.f32 %v40, %v53
  %v60 = vmul.f32 %v43, %v53
  %v61 = vmul.f32 %v46, %v53
  %v62 = vsub.f32 %v14, %v54
  %v63 = vsub.f32 %v15, %v55
  %v64 = vsub.f32 %v16, %v56
  %v65 = vsub.f32 %v17, %v57
  %v66 = vsub.f32 %v18, %v58
  %v67 = vsub.f32 %v19, %v59
  %v68 = vsub.f32 %v20, %v60
  %v69 = vsub.f32 %v21, %v61
  %v70 = vmul.f32 %v62, %v62
  %v71 = vmul.f32 %v63, %v63
  %v72 = vmul.f32 %v64, %v64
  %v73 = vmul.f32 %v65, %v65
  %v74 = vmul.f32 %v66, %v66
  %v75 = vmul.f32 %v67, %v67
  %v76 = vmul.f32 %v68, %v68
  %v77 = vmul.f32 %v69, %v69
  %v78 = vsel %vm22, %v70, 0.0
  %79 = vadd.xlane.f32.xlu0 %v78
  %v80 = vpop.xlane.xlu0 %79
  %v81 = vsel %vm22, %v71, 0.0
  %82 = vadd.xlane.f32.xlu0 %v81
  %v83 = vpop.xlane.xlu0 %82
  %v84 = vsel %vm22, %v72, 0.0
  %85 = vadd.xlane.f32.xlu0 %v84
  %v86 = vpop.xlane.xlu0 %85
  %v87 = vsel %vm22, %v73, 0.0
  %88 = vadd.xlane.f32.xlu0 %v87
  %v89 = vpop.xlane.xlu0 %88
  %v90 = vsel %vm22, %v74, 0.0
  %91 = vadd.xlane.f32.xlu0 %v90
  %v92 = vpop.xlane.xlu0 %91
  %v93 = vsel %vm22, %v75, 0.0
  %94 = vadd.xlane.f32.xlu0 %v93
  %v95 = vpop.xlane.xlu0 %94
  %v96 = vsel %vm22, %v76, 0.0
  %97 = vadd.xlane.f32.xlu0 %v96
  %v98 = vpop.xlane.xlu0 %97
  %v99 = vsel %vm22, %v77, 0.0
  %100 = vadd.xlane.f32.xlu0 %v99
  %v101 = vpop.xlane.xlu0 %100
  %v102 = vmul.f32 %v80, %v53
  %v103 = vmul.f32 %v83, %v53
  %v104 = vmul.f32 %v86, %v53
  %v105 = vmul.f32 %v89, %v53
  %v106 = vmul.f32 %v92, %v53
  %v107 = vmul.f32 %v95, %v53
  %v108 = vmul.f32 %v98, %v53
  %v109 = vmul.f32 %v101, %v53
  %v110 = vadd.f32 %v102, 1e-05
  %v111 = vadd.f32 %v103, 1e-05
  %v112 = vadd.f32 %v104, 1e-05
  %v113 = vadd.f32 %v105, 1e-05
  %v114 = vadd.f32 %v106, 1e-05
  %v115 = vadd.f32 %v107, 1e-05
  %v116 = vadd.f32 %v108, 1e-05
  %v117 = vadd.f32 %v109, 1e-05
  %v118 = vrsqrt.pop %v110
  %v119 = vmul.f32 %v118, %v110
  %v120 = vmul.f32 %v119, %v118
  %v121 = vmul.f32 0.5, %v120
  %v122 = vsub.f32 1.5, %v121
  %v123 = vmul.f32 %v118, %v122
  %vm124 = vweird.f32 %v110
  %vm125 = vweird.f32 %v118
  %vm126 = vmor %vm124, %vm125
  %v127 = vsel %vm126, %v118, %v123
  %v128 = vrsqrt.pop %v111
  %v129 = vmul.f32 %v128, %v111
  %v130 = vmul.f32 %v129, %v128
  %v131 = vmul.f32 0.5, %v130
  %v132 = vsub.f32 1.5, %v131
  %v133 = vmul.f32 %v128, %v132
  %vm134 = vweird.f32 %v111
  %vm135 = vweird.f32 %v128
  %vm136 = vmor %vm134, %vm135
  %v137 = vsel %vm136, %v128, %v133
  %v138 = vrsqrt.pop %v112
  %v139 = vmul.f32 %v138, %v112
  %v140 = vmul.f32 %v139, %v138
  %v141 = vmul.f32 0.5, %v140
  %v142 = vsub.f32 1.5, %v141
  %v143 = vmul.f32 %v138, %v142
  %vm144 = vweird.f32 %v112
  %vm145 = vweird.f32 %v138
  %vm146 = vmor %vm144, %vm145
  %v147 = vsel %vm146, %v138, %v143
  %v148 = vrsqrt.pop %v113
  %v149 = vmul.f32 %v148, %v113
  %v150 = vmul.f32 %v149, %v148
  %v151 = vmul.f32 0.5, %v150
  %v152 = vsub.f32 1.5, %v151
  %v153 = vmul.f32 %v148, %v152
  %vm154 = vweird.f32 %v113
  %vm155 = vweird.f32 %v148
  %vm156 = vmor %vm154, %vm155
  %v157 = vsel %vm156, %v148, %v153
  %v158 = vrsqrt.pop %v114
  %v159 = vmul.f32 %v158, %v114
  %v160 = vmul.f32 %v159, %v158
  %v161 = vmul.f32 0.5, %v160
  %v162 = vsub.f32 1.5, %v161
  %v163 = vmul.f32 %v158, %v162
  %vm164 = vweird.f32 %v114
  %vm165 = vweird.f32 %v158
  %vm166 = vmor %vm164, %vm165
  %v167 = vsel %vm166, %v158, %v163
  %v168 = vrsqrt.pop %v115
  %v169 = vmul.f32 %v168, %v115
  %v170 = vmul.f32 %v169, %v168
  %v171 = vmul.f32 0.5, %v170
  %v172 = vsub.f32 1.5, %v171
  %v173 = vmul.f32 %v168, %v172
  %vm174 = vweird.f32 %v115
  %vm175 = vweird.f32 %v168
  %vm176 = vmor %vm174, %vm175
  %v177 = vsel %vm176, %v168, %v173
  %v178 = vrsqrt.pop %v116
  %v179 = vmul.f32 %v178, %v116
  %v180 = vmul.f32 %v179, %v178
  %v181 = vmul.f32 0.5, %v180
  %v182 = vsub.f32 1.5, %v181
  %v183 = vmul.f32 %v178, %v182
  %vm184 = vweird.f32 %v116
  %vm185 = vweird.f32 %v178
  %vm186 = vmor %vm184, %vm185
  %v187 = vsel %vm186, %v178, %v183
  %v188 = vrsqrt.pop %v117
  %v189 = vmul.f32 %v188, %v117
  %v190 = vmul.f32 %v189, %v188
  %v191 = vmul.f32 0.5, %v190
  %v192 = vsub.f32 1.5, %v191
  %v193 = vmul.f32 %v188, %v192
  %vm194 = vweird.f32 %v117
  %vm195 = vweird.f32 %v188
  %vm196 = vmor %vm194, %vm195
  %v197 = vsel %vm196, %v188, %v193
  %v198 = vmul.f32 %v62, %v127
  %v199 = vmul.f32 %v63, %v137
  %v200 = vmul.f32 %v64, %v147
  %v201 = vmul.f32 %v65, %v157
  %v202 = vmul.f32 %v66, %v167
  %v203 = vmul.f32 %v67, %v177
  %v204 = vmul.f32 %v68, %v187
  %v205 = vmul.f32 %v69, %v197
  %v206 = vld [vmem:[%s1] sm:$0x1]
  %v208 = vperm.slane %v206, 0
  %v210 = vmul.f32 %v198, %v208
  %v211 = vmul.f32 %v199, %v208
  %v212 = vmul.f32 %v200, %v208
  %v213 = vmul.f32 %v201, %v208
  %v214 = vmul.f32 %v202, %v208
  %v215 = vmul.f32 %v203, %v208
  %v216 = vmul.f32 %v204, %v208
  %v217 = vmul.f32 %v205, %v208
  %v218 = vld [vmem:[%s2] sm:$0x1]
  %v220 = vperm.slane %v218, 0
  %v222 = vadd.f32 %v210, %v220
  %v223 = vadd.f32 %v211, %v220
  %v224 = vadd.f32 %v212, %v220
  %v225 = vadd.f32 %v213, %v220
  %v226 = vadd.f32 %v214, %v220
  %v227 = vadd.f32 %v215, %v220
  %v228 = vadd.f32 %v216, %v220
  %v229 = vadd.f32 %v217, %v220
  %230 = vst.msk [vmem:[%s3] sm:$0xff] %vm22, %v222
  %231 = vst.msk [vmem:[%s3 + $0x8] sm:$0xff] %vm22, %v223
  %232 = vst.msk [vmem:[%s3 + $0x10] sm:$0xff] %vm22, %v224
  %233 = vst.msk [vmem:[%s3 + $0x18] sm:$0xff] %vm22, %v225
  %234 = vst.msk [vmem:[%s3 + $0x20] sm:$0xff] %vm22, %v226
  %235 = vst.msk [vmem:[%s3 + $0x28] sm:$0xff] %vm22, %v227
  %236 = vst.msk [vmem:[%s3 + $0x30] sm:$0xff] %vm22, %v228
  %237 = vst.msk [vmem:[%s3 + $0x38] sm:$0xff] %vm22, %v229
  // Predicated region
  $region14: #{_lambda_.14} parent=0 // pred_check
    _
  $region15: #{_lambda_.14} parent=0 // pred_check_branch
    %239 = sbr.rel (0) target = $region17
  $region16: #{_lambda_.14} parent=0 // pred_region
    _
  $region17: #{_lambda_.14} parent=0 // pred_fallthru
    _
  // Predicated region
  $region18: #{_lambda_.14} parent=0 // pred_check
    _
  $region19: #{_lambda_.14} parent=0 // pred_check_branch
    %241 = sbr.rel (0) target = $region21
  $region20: #{_lambda_.14} parent=0 // pred_region
    _
  $region21: #{_lambda_.14} parent=0 // pred_fallthru
    _

// kernel: _lambda_.16
$region0: #{_lambda_.16}
  #allocation0 [shape = 'u32[]', space=smem, size = 0x4, offset = 0x4, fixed_abs, tag = 'smem constant byte address 0x4 - core index']
  #allocation1 [shape = 'u32[72,128]{1,0:T(1,128)}', space=vmem, size = 0x9000, scoped, tag = 'internal scratch']
  %s0 = inlined_call_operand.vmem [shape: f32[8,2,8,16], index: 0, kind: input, shape index: {}]
  %s1 = inlined_call_operand.vmem [shape: f32[8,2,8,16], index: 1, kind: input, shape index: {}]
  %s2 = inlined_call_operand.vmem [shape: f32[8,2,8,16], index: 2, kind: input, shape index: {}]
  %s3 = inlined_call_operand.vmem [shape: f32[8,1,8], index: 3, kind: input, shape index: {}]
  %s4 = inlined_call_operand.vmem [shape: f32[8,2,8,16], index: 4, kind: output, shape index: {}]
  %s5 = sld [smem:[#allocation0]]
  $region49: #{_lambda_.16} parent=0
    _
  %s7 = ssub.s32 1, %s5
  %s8 = scalar_select 0, %s7, %s5
  loop: start=0, step=1, limit=10
  $region2: #{_lambda_.16} parent=0 // loop_pre_header
    _
  $region3: #{_lambda_.16} parent=0 // loop_header
    %s10 = sphi 0, %s14
    %p11 = scmp.ge.s32.totalorder %s10, 10
    %s20 = sphi 0, %s22
    %s23 = sphi 0, %s20
    %s24 = sphi 0, %s23
    %s40 = sphi 0, %s24
    %s46 = sphi 0, %s48
    %s49 = sphi 0, %s46
    %s50 = sphi 0, %s49
    %s66 = sphi 0, %s50
    %s72 = sphi 0, %s74
    %s75 = sphi 0, %s72
    %s76 = sphi 0, %s75
    %s92 = sphi 0, %s76
    %s98 = sphi 0, %s100
    %s101 = sphi 0, %s98
    %s102 = sphi 0, %s101
    %s118 = sphi 0, %s102
    %s124 = sphi 0, %s126
    %s127 = sphi 0, %s124
    %s128 = sphi 0, %s127
    %s144 = sphi 0, %s128
  $region4: #{_lambda_.16} parent=0 // loop_header_branch
    %13 = sbr.rel (%p11) target = $region8
  $region5: #{_lambda_.16} parent=0 // loop_body
    %s15 = ssub.s32 %s10, 1
    %s16 = ssub.s32 %s10, 2
    %s17 = sadd.s32 %s10, 1
    %s18 = ssub.s32 %s10, %s17
    %p19 = scmp.eq.s32.totalorder %s18, 0
    %s21 = sadd.s32 %s20, 1
    %s22 = scalar_select %p19, %s20, %s21
    %p25 = pneg %p19
    %p26 = scmp.eq.s32.totalorder %s10, 7
    %p27 = por %p25, %p26
    %p28 = scmp.ne.s32.totalorder %s20, %s23
    %p29 = scmp.eq.s32.totalorder %s10, 0
    %p30 = por %p28, %p29
    %p31 = scmp.ne.s32.totalorder %s20, %s23
    %p32 = scmp.eq.s32.totalorder %s15, 7
    %p33 = por %p31, %p32
    %p34 = scmp.ne.s32.totalorder %s23, %s24
    %p35 = scmp.eq.s32.totalorder %s15, 0
    %p36 = por %p34, %p35
    %p37 = scmp.ne.s32.totalorder %s23, %s24
    %p38 = scmp.eq.s32.totalorder %s16, 7
    %p39 = por %p37, %p38
    %p41 = scmp.ne.s32.totalorder %s24, %s40
    %p42 = scmp.eq.s32.totalorder %s16, 0
    %p43 = por %p41, %p42
    %s44 = ssub.s32 %s10, %s17
    %p45 = scmp.eq.s32.totalorder %s44, 0
    %s47 = sadd.s32 %s46, 1
    %s48 = scalar_select %p45, %s46, %s47
    %p51 = pneg %p45
    %p52 = scmp.eq.s32.totalorder %s10, 7
    %p53 = por %p51, %p52
    %p54 = scmp.ne.s32.totalorder %s46, %s49
    %p55 = scmp.eq.s32.totalorder %s10, 0
    %p56 = por %p54, %p55
    %p57 = scmp.ne.s32.totalorder %s46, %s49
    %p58 = scmp.eq.s32.totalorder %s15, 7
    %p59 = por %p57, %p58
    %p60 = scmp.ne.s32.totalorder %s49, %s50
    %p61 = scmp.eq.s32.totalorder %s15, 0
    %p62 = por %p60, %p61
    %p63 = scmp.ne.s32.totalorder %s49, %s50
    %p64 = scmp.eq.s32.totalorder %s16, 7
    %p65 = por %p63, %p64
    %p67 = scmp.ne.s32.totalorder %s50, %s66
    %p68 = scmp.eq.s32.totalorder %s16, 0
    %p69 = por %p67, %p68
    %s70 = ssub.s32 %s10, %s17
    %p71 = scmp.eq.s32.totalorder %s70, 0
    %s73 = sadd.s32 %s72, 1
    %s74 = scalar_select %p71, %s72, %s73
    %p77 = pneg %p71
    %p78 = scmp.eq.s32.totalorder %s10, 7
    %p79 = por %p77, %p78
    %p80 = scmp.ne.s32.totalorder %s72, %s75
    %p81 = scmp.eq.s32.totalorder %s10, 0
    %p82 = por %p80, %p81
    %p83 = scmp.ne.s32.totalorder %s72, %s75
    %p84 = scmp.eq.s32.totalorder %s15, 7
    %p85 = por %p83, %p84
    %p86 = scmp.ne.s32.totalorder %s75, %s76
    %p87 = scmp.eq.s32.totalorder %s15, 0
    %p88 = por %p86, %p87
    %p89 = scmp.ne.s32.totalorder %s75, %s76
    %p90 = scmp.eq.s32.totalorder %s16, 7
    %p91 = por %p89, %p90
    %p93 = scmp.ne.s32.totalorder %s76, %s92
    %p94 = scmp.eq.s32.totalorder %s16, 0
    %p95 = por %p93, %p94
    %s96 = ssub.s32 %s10, %s17
    %p97 = scmp.eq.s32.totalorder %s96, 0
    %s99 = sadd.s32 %s98, 1
    %s100 = scalar_select %p97, %s98, %s99
    %p103 = pneg %p97
    %p104 = scmp.eq.s32.totalorder %s10, 7
    %p105 = por %p103, %p104
    %p106 = scmp.ne.s32.totalorder %s98, %s101
    %p107 = scmp.eq.s32.totalorder %s10, 0
    %p108 = por %p106, %p107
    %p109 = scmp.ne.s32.totalorder %s98, %s101
    %p110 = scmp.eq.s32.totalorder %s15, 7
    %p111 = por %p109, %p110
    %p112 = scmp.ne.s32.totalorder %s101, %s102
    %p113 = scmp.eq.s32.totalorder %s15, 0
    %p114 = por %p112, %p113
    %p115 = scmp.ne.s32.totalorder %s101, %s102
    %p116 = scmp.eq.s32.totalorder %s16, 7
    %p117 = por %p115, %p116
    %p119 = scmp.ne.s32.totalorder %s102, %s118
    %p120 = scmp.eq.s32.totalorder %s16, 0
    %p121 = por %p119, %p120
    %s122 = ssub.s32 %s10, %s17
    %p123 = scmp.eq.s32.totalorder %s122, 0
    %s125 = sadd.s32 %s124, 1
    %s126 = scalar_select %p123, %s124, %s125
    %p129 = pneg %p123
    %p130 = scmp.eq.s32.totalorder %s10, 7
    %p131 = por %p129, %p130
    %p132 = scmp.ne.s32.totalorder %s124, %s127
    %p133 = scmp.eq.s32.totalorder %s10, 0
    %p134 = por %p132, %p133
    %p135 = scmp.ne.s32.totalorder %s124, %s127
    %p136 = scmp.eq.s32.totalorder %s15, 7
    %p137 = por %p135, %p136
    %p138 = scmp.ne.s32.totalorder %s127, %s128
    %p139 = scmp.eq.s32.totalorder %s15, 0
    %p140 = por %p138, %p139
    %p141 = scmp.ne.s32.totalorder %s127, %s128
    %p142 = scmp.eq.s32.totalorder %s16, 7
    %p143 = por %p141, %p142
    %p145 = scmp.ne.s32.totalorder %s128, %s144
    %p146 = scmp.eq.s32.totalorder %s16, 0
    %p147 = por %p145, %p146
    %p148 = scmp.le.s32.totalorder 1, %s10
    %p149 = scmp.lt.s32.totalorder %s10, 9
    %p150 = pnand %p148, %p149
    %p151 = pneg %p150
    // Predicated region
    $region9: #{_lambda_.16} parent=5 // pred_check
      _
    $region10: #{_lambda_.16} parent=5 // pred_check_branch
      %153 = sbr.rel (%p150) target = $region12
    $region11: #{_lambda_.16} parent=5 // pred_region
      %s154 = ssub.s32 %s10, 1
    $region12: #{_lambda_.16} parent=5 // pred_fallthru
      _
    %p155 = scmp.lt.s32.totalorder %s10, 8
    // Predicated region
    $region13: #{_lambda_.16} parent=5 // pred_check
      %p156 = pneg %p155
    $region14: #{_lambda_.16} parent=5 // pred_check_branch
      %158 = sbr.rel (%p156) target = $region16
    $region15: #{_lambda_.16} parent=5 // pred_region
      // Predicated region
      $region17: #{_lambda_.16} parent=15 // pred_check
        %p159 = pneg %p30
      $region18: #{_lambda_.16} parent=15 // pred_check_branch
        %161 = sbr.rel (%p159) target = $region20
      $region19: #{_lambda_.16} parent=15 // pred_region
        %p162 = scmp.lt.s32.totalorder %s10, 7
        %s163 = scalar_select %p162, %s10, 7
        %s164 = smul.addr %s163, 2
        %s165 = smul.addr %s164, 8
        %s166 = scalar_lea.vmem %s0, %s165
      $region20: #{_lambda_.16} parent=15 // pred_fallthru
        _
      // Predicated region
      $region21: #{_lambda_.16} parent=15 // pred_check
        %p167 = pneg %p56
      $region22: #{_lambda_.16} parent=15 // pred_check_branch
        %169 = sbr.rel (%p167) target = $region24
      $region23: #{_lambda_.16} parent=15 // pred_region
        %p170 = scmp.lt.s32.totalorder %s10, 7
        %s171 = scalar_select %p170, %s10, 7
        %s172 = smul.addr %s171, 2
        %s173 = smul.addr %s172, 8
        %s174 = scalar_lea.vmem %s1, %s173
      $region24: #{_lambda_.16} parent=15 // pred_fallthru
        _
      // Predicated region
      $region25: #{_lambda_.16} parent=15 // pred_check
        %p175 = pneg %p82
      $region26: #{_lambda_.16} parent=15 // pred_check_branch
        %177 = sbr.rel (%p175) target = $region28
      $region27: #{_lambda_.16} parent=15 // pred_region
        %p178 = scmp.lt.s32.totalorder %s10, 7
        %s179 = scalar_select %p178, %s10, 7
        %s180 = smul.addr %s179, 2
        %s181 = smul.addr %s180, 8
        %s182 = scalar_lea.vmem %s2, %s181
      $region28: #{_lambda_.16} parent=15 // pred_fallthru
        _
      // Predicated region
      $region29: #{_lambda_.16} parent=15 // pred_check
        %p183 = pneg %p108
      $region30: #{_lambda_.16} parent=15 // pred_check_branch
        %185 = sbr.rel (%p183) target = $region32
      $region31: #{_lambda_.16} parent=15 // pred_region
        %p186 = scmp.lt.s32.totalorder %s10, 7
        %s187 = scalar_select %p186, %s10, 7
        %s188 = scalar_lea.vmem %s3, %s187
      $region32: #{_lambda_.16} parent=15 // pred_fallthru
        _
    $region16: #{_lambda_.16} parent=5 // pred_fallthru
      _
    %p189 = scmp.le.s32.totalorder 1, %s10
    %p190 = scmp.lt.s32.totalorder %s10, 9
    %p191 = pnand %p189, %p190
    %p192 = pneg %p191
    // Predicated region
    $region33: #{_lambda_.16} parent=5 // pred_check
      _
    $region34: #{_lambda_.16} parent=5 // pred_check_branch
      %194 = sbr.rel (%p191) target = $region36
    $region35: #{_lambda_.16} parent=5 // pred_region
      %s195 = ssub.s32 %s10, 1
      %p196 = scmp.lt.s32.totalorder %s15, 7
      %s197 = scalar_select %p196, %s15, 7
      %s198 = smul.addr %s197, 2
      %s199 = smul.addr %s198, 8
      %s200 = scalar_lea.vmem %s0, %s199
      %p201 = pneg %p36
      %p202 = pneg %p33
      %p203 = scmp.lt.s32.totalorder %s15, 7
      %s204 = scalar_select %p203, %s15, 7
      %s205 = smul.addr %s204, 2
      %s206 = smul.addr %s205, 8
      %s207 = scalar_lea.vmem %s1, %s206
      %p208 = pneg %p62
      %p209 = pneg %p59
      %p210 = scmp.lt.s32.totalorder %s15, 7
      %s211 = scalar_select %p210, %s15, 7
      %s212 = smul.addr %s211, 2
      %s213 = smul.addr %s212, 8
      %s214 = scalar_lea.vmem %s2, %s213
      %p215 = pneg %p88
      %p216 = pneg %p85
      %p217 = scmp.lt.s32.totalorder %s15, 7
      %s218 = scalar_select %p217, %s15, 7
      %s219 = scalar_lea.vmem %s3, %s218
      %p220 = pneg %p114
      %p221 = pneg %p111
      %p222 = pneg %p140
      %p223 = pneg %p137
      %p224 = scmp.lt.s32.totalorder %s15, 7
      %s225 = scalar_select %p224, %s15, 7
      %s226 = smul.addr %s225, 2
      %s227 = smul.addr %s226, 8
      %s228 = scalar_lea.vmem %s4, %s227
      %p229 = scmp.lt.s32.totalorder %s15, 7
      %s230 = scalar_select %p229, %s15, 7
      %s231 = smul.addr %s230, 2
      %s232 = smul.addr %s231, 8
      %s233 = scalar_lea.vmem %s0, %s232
      %p234 = scmp.lt.s32.totalorder %s15, 7
      %s235 = scalar_select %p234, %s15, 7
      %s236 = smul.addr %s235, 2
      %s237 = smul.addr %s236, 8
      %s238 = scalar_lea.vmem %s1, %s237
      %p239 = scmp.lt.s32.totalorder %s15, 7
      %s240 = scalar_select %p239, %s15, 7
      %s241 = smul.addr %s240, 2
      %s242 = smul.addr %s241, 8
      %s243 = scalar_lea.vmem %s2, %s242
      %p244 = scmp.lt.s32.totalorder %s15, 7
      %s245 = scalar_select %p244, %s15, 7
      %s246 = scalar_lea.vmem %s3, %s245
      %p247 = scmp.lt.s32.totalorder %s15, 7
      %s248 = scalar_select %p247, %s15, 7
      %s249 = smul.addr %s248, 2
      %s250 = smul.addr %s249, 8
      %s251 = scalar_lea.vmem %s4, %s250
      %v253 = vld [vmem:[%s233] sm:$0xff]
      %v254 = vld [vmem:[%s233 + $0x8] sm:$0xff]
      %v255 = vpack.c.bf16 %v253, %v253
      %v256 = vpack.c.bf16 %v254, %v254
      %v257 = vld [vmem:[%s238] sm:$0xff]
      %v258 = vld [vmem:[%s238 + $0x8] sm:$0xff]
      %v259 = vpack.c.bf16 %v257, %v257
      %v260 = vpack.c.bf16 %v258, %v258
      %v261 = vld [vmem:[%s243] sm:$0xff]
      %v262 = vld [vmem:[%s243 + $0x8] sm:$0xff]
      %v263 = vpack.c.bf16 %v261, %v261
      %v264 = vpack.c.bf16 %v262, %v262
      %v265 = vld [vmem:[%s246] sm:$0x1]
      %vm266 = vcmask 130048
      %v268 = vsel %vm266, %v255, 0
      %v271 = vsel %vm266, %v259, 0
      %273 = vmatpush.bf16.xpose.msra.mxu0 0
      %274 = vmatpush.bf16.xpose.msra.mxu0 0
      %275 = vmatpush.bf16.xpose.msra.mxu0 0
      %276 = vmatpush.bf16.xpose.msra.mxu0 0
      %277 = vmatpush.bf16.xpose.msra.mxu0 0
      %278 = vmatpush.bf16.xpose.msra.mxu0 0
      %279 = vmatpush.bf16.xpose.msra.mxu0 0
      %280 = vmatpush.bf16.xpose.msra.mxu0 %v271
      %281 = vmatmul.bf16.gmra.mxu0 %v268
      %v282 = vpop.f32.mrf.mxu0
      %v283 = vadd.f32 0.0, %v282
      %v284 = vpop.f32.mrf.mxu0
      %285 = vdwg.mxu0
      %v287 = vsel %vm266, %v256, 0
      %v290 = vsel %vm266, %v260, 0
      %292 = vmatpush.bf16.xpose.msra.mxu0 0
      %293 = vmatpush.bf16.xpose.msra.mxu0 0
      %294 = vmatpush.bf16.xpose.msra.mxu0 0
      %295 = vmatpush.bf16.xpose.msra.mxu0 0
      %296 = vmatpush.bf16.xpose.msra.mxu0 0
      %297 = vmatpush.bf16.xpose.msra.mxu0 0
      %298 = vmatpush.bf16.xpose.msra.mxu0 0
      %299 = vmatpush.bf16.xpose.msra.mxu0 %v290
      %300 = vmatmul.bf16.gmra.mxu0 %v287
      %v301 = vpop.f32.mrf.mxu0
      %v302 = vadd.f32 0.0, %v301
      %v303 = vpop.f32.mrf.mxu0
      %304 = vdwg.mxu0
      %v305 = vmul.f32 %v283, 0.25
      %v306 = vmul.f32 %v302, 0.25
      %v307 = vsub.f32 1.0, %v265
      %v308 = vmul.f32 %v307, -1e+09
      %v310 = vperm.slane %v308, 0
      %v312 = vadd.f32 %v305, %v310
      %v313 = vadd.f32 %v306, %v310
      %vm314 = vcmask 64512
      %v315 = vsel %vm314, %v312, -inf
      %316 = vmax.xlane.f32.xlu0 %v315
      %v317 = vpop.xlane.xlu0 %316
      %v318 = vsel %vm314, %v313, -inf
      %319 = vmax.xlane.f32.xlu0 %v318
      %v320 = vpop.xlane.xlu0 %319
      %v321 = vsub.f32 %v312, %v317
      %v322 = vsub.f32 %v313, %v320
      %v323 = vmul.f32 %v321, 1.442695
      %v324 = vpow.pop %v323
      %v325 = vmul.f32 %v322, 1.442695
      %v326 = vpow.pop %v325
      %v327 = vsel %vm314, %v324, 0.0
      %328 = vadd.xlane.f32.xlu0 %v327
      %v329 = vpop.xlane.xlu0 %328
      %v330 = vsel %vm314, %v326, 0.0
      %331 = vadd.xlane.f32.xlu0 %v330
      %v332 = vpop.xlane.xlu0 %331
      %v333 = vrcp.pop %v329
      %v334 = vrcp.pop %v332
      %v335 = vmul.f32 %v324, %v333
      %v336 = vmul.f32 %v326, %v334
      %v337 = vpack.c.bf16 %v335, %v335
      %v338 = vpack.c.bf16 %v336, %v336
      %v340 = vsel %vm314, %v337, 0
      %vm342 = vcmask 1043456
      %v344 = vsel %vm342, %v263, 0
      %346 = vmatpush.bf16.msra.mxu0 0
      %347 = vmatpush.bf16.msra.mxu0 0
      %348 = vmatpush.bf16.msra.mxu0 0
      %349 = vmatpush.bf16.msra.mxu0 0
      %350 = vmatpush.bf16.msra.mxu0 0
      %351 = vmatpush.bf16.msra.mxu0 0
      %352 = vmatpush.bf16.msra.mxu0 0
      %353 = vmatpush.bf16.msra.mxu0 %v344
      %354 = vmatmul.bf16.gmra.mxu0 %v340
      %v355 = vpop.f32.mrf.mxu0
      %v356 = vadd.f32 0.0, %v355
      %v357 = vpop.f32.mrf.mxu0
      %358 = vdwg.mxu0
      %v360 = vsel %vm314, %v338, 0
      %v363 = vsel %vm342, %v264, 0
      %365 = vmatpush.bf16.msra.mxu0 0
      %366 = vmatpush.bf16.msra.mxu0 0
      %367 = vmatpush.bf16.msra.mxu0 0
      %368 = vmatpush.bf16.msra.mxu0 0
      %369 = vmatpush.bf16.msra.mxu0 0
      %370 = vmatpush.bf16.msra.mxu0 0
      %371 = vmatpush.bf16.msra.mxu0 0
      %372 = vmatpush.bf16.msra.mxu0 %v363
      %373 = vmatmul.bf16.gmra.mxu0 %v360
      %v374 = vpop.f32.mrf.mxu0
      %v375 = vadd.f32 0.0, %v374
      %v376 = vpop.f32.mrf.mxu0
      %377 = vdwg.mxu0
      %378 = vst.msk [vmem:[%s251] sm:$0xff] %vm266, %v356
      %379 = vst.msk [vmem:[%s251 + $0x8] sm:$0xff] %vm266, %v375
      %p380 = scmp.lt.s32.totalorder %s15, 7
      %s381 = scalar_select %p380, %s15, 7
      %s382 = smul.addr %s381, 2
      %s383 = smul.addr %s382, 8
      %s384 = scalar_lea.vmem %s4, %s383
      // Predicated region
      $region37: #{_lambda_.16} parent=35 // pred_check
        %p385 = pneg %p137
      $region38: #{_lambda_.16} parent=35 // pred_check_branch
        %387 = sbr.rel (%p385) target = $region40
      $region39: #{_lambda_.16} parent=35 // pred_region
        _
      $region40: #{_lambda_.16} parent=35 // pred_fallthru
        _
    $region36: #{_lambda_.16} parent=5 // pred_fallthru
      _
    %p388 = scmp.le.s32.totalorder 2, %s10
    // Predicated region
    $region41: #{_lambda_.16} parent=5 // pred_check
      %p389 = pneg %p388
    $region42: #{_lambda_.16} parent=5 // pred_check_branch
      %391 = sbr.rel (%p389) target = $region44
    $region43: #{_lambda_.16} parent=5 // pred_region
      %s392 = ssub.s32 %s10, 2
      // Predicated region
      $region45: #{_lambda_.16} parent=43 // pred_check
        %p393 = pneg %p143
      $region46: #{_lambda_.16} parent=43 // pred_check_branch
        %395 = sbr.rel (%p393) target = $region48
      $region47: #{_lambda_.16} parent=43 // pred_region
        %p396 = scmp.lt.s32.totalorder %s16, 7
        %s397 = scalar_select %p396, %s16, 7
        %s398 = smul.addr %s397, 2
        %s399 = smul.addr %s398, 8
        %s400 = scalar_lea.vmem %s4, %s399
      $region48: #{_lambda_.16} parent=43 // pred_fallthru
        _
    $region44: #{_lambda_.16} parent=5 // pred_fallthru
      _
  $region6: #{_lambda_.16} parent=0 // loop_footer
    %s14 = sadd.s32 1, %s10
  $region7: #{_lambda_.16} parent=0 // loop_footer_branch
    %9 = sbr.rel target = $region3
  $region8: #{_lambda_.16} parent=0 // loop_exit
    _

// kernel: _lambda_.17
$region0: #{_lambda_.17}
  #allocation0 [shape = 'u32[]', space=smem, size = 0x4, offset = 0x4, fixed_abs, tag = 'smem constant byte address 0x4 - core index']
  #allocation1 [shape = 'u32[72,128]{1,0:T(1,128)}', space=vmem, size = 0x9000, scoped, tag = 'internal scratch']
  %s0 = inlined_call_operand.vmem [shape: f32[64,32], index: 0, kind: input, shape index: {}]
  %s1 = inlined_call_operand.vmem [shape: bf16[32,32], index: 1, kind: input, shape index: {}]
  %s2 = inlined_call_operand.vmem [shape: f32[1,32], index: 2, kind: input, shape index: {}]
  %s3 = inlined_call_operand.vmem [shape: f32[64,32], index: 3, kind: input, shape index: {}]
  %s4 = inlined_call_operand.vmem [shape: f32[1,32], index: 4, kind: input, shape index: {}]
  %s5 = inlined_call_operand.vmem [shape: f32[1,32], index: 5, kind: input, shape index: {}]
  %s6 = inlined_call_operand.vmem [shape: f32[64,32], index: 6, kind: output, shape index: {}]
  %s7 = sld [smem:[#allocation0]]
  $region34: #{_lambda_.17} parent=0
    _
  %s9 = ssub.s32 1, %s7
  %s10 = scalar_select 0, %s9, %s7
  // Predicated region
  $region2: #{_lambda_.17} parent=0 // pred_check
    _
  $region3: #{_lambda_.17} parent=0 // pred_check_branch
    %12 = sbr.rel (0) target = $region5
  $region4: #{_lambda_.17} parent=0 // pred_region
    _
  $region5: #{_lambda_.17} parent=0 // pred_fallthru
    _
  // Predicated region
  $region6: #{_lambda_.17} parent=0 // pred_check
    _
  $region7: #{_lambda_.17} parent=0 // pred_check_branch
    %14 = sbr.rel (0) target = $region9
  $region8: #{_lambda_.17} parent=0 // pred_region
    _
  $region9: #{_lambda_.17} parent=0 // pred_fallthru
    _
  // Predicated region
  $region10: #{_lambda_.17} parent=0 // pred_check
    _
  $region11: #{_lambda_.17} parent=0 // pred_check_branch
    %16 = sbr.rel (0) target = $region13
  $region12: #{_lambda_.17} parent=0 // pred_region
    _
  $region13: #{_lambda_.17} parent=0 // pred_fallthru
    _
  // Predicated region
  $region14: #{_lambda_.17} parent=0 // pred_check
    _
  $region15: #{_lambda_.17} parent=0 // pred_check_branch
    %18 = sbr.rel (0) target = $region17
  $region16: #{_lambda_.17} parent=0 // pred_region
    _
  $region17: #{_lambda_.17} parent=0 // pred_fallthru
    _
  // Predicated region
  $region18: #{_lambda_.17} parent=0 // pred_check
    _
  $region19: #{_lambda_.17} parent=0 // pred_check_branch
    %20 = sbr.rel (0) target = $region21
  $region20: #{_lambda_.17} parent=0 // pred_region
    _
  $region21: #{_lambda_.17} parent=0 // pred_fallthru
    _
  // Predicated region
  $region22: #{_lambda_.17} parent=0 // pred_check
    _
  $region23: #{_lambda_.17} parent=0 // pred_check_branch
    %22 = sbr.rel (0) target = $region25
  $region24: #{_lambda_.17} parent=0 // pred_region
    _
  $region25: #{_lambda_.17} parent=0 // pred_fallthru
    _
  %v24 = vld [vmem:[%s0] sm:$0xff]
  %v25 = vld [vmem:[%s0 + $0x8] sm:$0xff]
  %v26 = vld [vmem:[%s0 + $0x10] sm:$0xff]
  %v27 = vld [vmem:[%s0 + $0x18] sm:$0xff]
  %v28 = vld [vmem:[%s0 + $0x20] sm:$0xff]
  %v29 = vld [vmem:[%s0 + $0x28] sm:$0xff]
  %v30 = vld [vmem:[%s0 + $0x30] sm:$0xff]
  %v31 = vld [vmem:[%s0 + $0x38] sm:$0xff]
  %v32 = vpack.c.bf16 %v25, %v24
  %v33 = vpack.c.bf16 %v27, %v26
  %v34 = vpack.c.bf16 %v29, %v28
  %v35 = vpack.c.bf16 %v31, %v30
  %v36 = vld [vmem:[%s1] sm:$0xf]
  %v37 = vld [vmem:[%s1 + $0x4] sm:$0xf]
  %v38 = vld [vmem:[%s1 + $0x8] sm:$0xf]
  %v39 = vld [vmem:[%s1 + $0xc] sm:$0xf]
  %v40 = vld [vmem:[%s2] sm:$0x1]
  %v42 = vperm.slane %v40, 0
  %v48 = vunpack.c.l.b16 %v36
  %v49 = vunpack.c.l.b16 %v37
  %v50 = vunpack.c.l.b16 %v38
  %v51 = vunpack.c.l.b16 %v39
  %v52 = vpack.c.b16 %v49, %v48
  %v53 = vpack.c.b16 %v51, %v50
  %vm56 = vcmask 261120
  %v58 = vsel %vm56, %v32, 0
  %v61 = vsel %vm56, %v33, 0
  %v64 = vsel %vm56, %v34, 0
  %v67 = vsel %vm56, %v35, 0
  %69 = vmatpush.bf16.msra.mxu0 0
  %70 = vmatpush.bf16.msra.mxu0 0
  %71 = vmatpush.bf16.msra.mxu0 0
  %72 = vmatpush.bf16.msra.mxu0 0
  %73 = vmatpush.bf16.msra.mxu0 0
  %74 = vmatpush.bf16.msra.mxu0 0
  %75 = vmatpush.bf16.msra.mxu0 %v53
  %76 = vmatpush.bf16.msra.mxu0 %v52
  %77 = vmatmul.bf16.gmra.mxu0 %v58
  %v78 = vpop.f32.mrf.mxu0
  %v79 = vadd.f32 %v42, %v78
  %v80 = vpop.f32.mrf.mxu0
  %v81 = vadd.f32 %v42, %v80
  %82 = vmatmul.bf16.gmra.mxu0 %v61
  %v83 = vpop.f32.mrf.mxu0
  %v84 = vadd.f32 %v42, %v83
  %v85 = vpop.f32.mrf.mxu0
  %v86 = vadd.f32 %v42, %v85
  %87 = vmatmul.bf16.gmra.mxu0 %v64
  %v88 = vpop.f32.mrf.mxu0
  %v89 = vadd.f32 %v42, %v88
  %v90 = vpop.f32.mrf.mxu0
  %v91 = vadd.f32 %v42, %v90
  %92 = vmatmul.bf16.gmra.mxu0 %v67
  %v93 = vpop.f32.mrf.mxu0
  %v94 = vadd.f32 %v42, %v93
  %v95 = vpop.f32.mrf.mxu0
  %v96 = vadd.f32 %v42, %v95
  %97 = vdwg.mxu0
  %v98 = vld [vmem:[%s3] sm:$0xff]
  %v99 = vld [vmem:[%s3 + $0x8] sm:$0xff]
  %v100 = vld [vmem:[%s3 + $0x10] sm:$0xff]
  %v101 = vld [vmem:[%s3 + $0x18] sm:$0xff]
  %v102 = vld [vmem:[%s3 + $0x20] sm:$0xff]
  %v103 = vld [vmem:[%s3 + $0x28] sm:$0xff]
  %v104 = vld [vmem:[%s3 + $0x30] sm:$0xff]
  %v105 = vld [vmem:[%s3 + $0x38] sm:$0xff]
  %v106 = vadd.f32 %v79, %v98
  %v107 = vadd.f32 %v81, %v99
  %v108 = vadd.f32 %v84, %v100
  %v109 = vadd.f32 %v86, %v101
  %v110 = vadd.f32 %v89, %v102
  %v111 = vadd.f32 %v91, %v103
  %v112 = vadd.f32 %v94, %v104
  %v113 = vadd.f32 %v96, %v105
  %v114 = vsel %vm56, %v106, 0.0
  %115 = vadd.xlane.f32.xlu0 %v114
  %v116 = vpop.xlane.xlu0 %115
  %v117 = vsel %vm56, %v107, 0.0
  %118 = vadd.xlane.f32.xlu0 %v117
  %v119 = vpop.xlane.xlu0 %118
  %v120 = vsel %vm56, %v108, 0.0
  %121 = vadd.xlane.f32.xlu0 %v120
  %v122 = vpop.xlane.xlu0 %121
  %v123 = vsel %vm56, %v109, 0.0
  %124 = vadd.xlane.f32.xlu0 %v123
  %v125 = vpop.xlane.xlu0 %124
  %v126 = vsel %vm56, %v110, 0.0
  %127 = vadd.xlane.f32.xlu0 %v126
  %v128 = vpop.xlane.xlu0 %127
  %v129 = vsel %vm56, %v111, 0.0
  %130 = vadd.xlane.f32.xlu0 %v129
  %v131 = vpop.xlane.xlu0 %130
  %v132 = vsel %vm56, %v112, 0.0
  %133 = vadd.xlane.f32.xlu0 %v132
  %v134 = vpop.xlane.xlu0 %133
  %v135 = vsel %vm56, %v113, 0.0
  %136 = vadd.xlane.f32.xlu0 %v135
  %v137 = vpop.xlane.xlu0 %136
  %v138 = vrcp.pop 32.0
  %v139 = vmul.f32 32.0, %v138
  %v140 = vsub.f32 1.0, %v139
  %v141 = vmul.f32 %v138, %v140
  %v142 = vadd.f32 %v138, %v141
  %vm143 = vweird.f32 %v138
  %v144 = vsel %vm143, %v138, %v142
  %v145 = vmul.f32 %v116, %v144
  %v146 = vmul.f32 %v119, %v144
  %v147 = vmul.f32 %v122, %v144
  %v148 = vmul.f32 %v125, %v144
  %v149 = vmul.f32 %v128, %v144
  %v150 = vmul.f32 %v131, %v144
  %v151 = vmul.f32 %v134, %v144
  %v152 = vmul.f32 %v137, %v144
  %v153 = vsub.f32 %v106, %v145
  %v154 = vsub.f32 %v107, %v146
  %v155 = vsub.f32 %v108, %v147
  %v156 = vsub.f32 %v109, %v148
  %v157 = vsub.f32 %v110, %v149
  %v158 = vsub.f32 %v111, %v150
  %v159 = vsub.f32 %v112, %v151
  %v160 = vsub.f32 %v113, %v152
  %v161 = vmul.f32 %v153, %v153
  %v162 = vmul.f32 %v154, %v154
  %v163 = vmul.f32 %v155, %v155
  %v164 = vmul.f32 %v156, %v156
  %v165 = vmul.f32 %v157, %v157
  %v166 = vmul.f32 %v158, %v158
  %v167 = vmul.f32 %v159, %v159
  %v168 = vmul.f32 %v160, %v160
  %v169 = vsel %vm56, %v161, 0.0
  %170 = vadd.xlane.f32.xlu0 %v169
  %v171 = vpop.xlane.xlu0 %170
  %v172 = vsel %vm56, %v162, 0.0
  %173 = vadd.xlane.f32.xlu0 %v172
  %v174 = vpop.xlane.xlu0 %173
  %v175 = vsel %vm56, %v163, 0.0
  %176 = vadd.xlane.f32.xlu0 %v175
  %v177 = vpop.xlane.xlu0 %176
  %v178 = vsel %vm56, %v164, 0.0
  %179 = vadd.xlane.f32.xlu0 %v178
  %v180 = vpop.xlane.xlu0 %179
  %v181 = vsel %vm56, %v165, 0.0
  %182 = vadd.xlane.f32.xlu0 %v181
  %v183 = vpop.xlane.xlu0 %182
  %v184 = vsel %vm56, %v166, 0.0
  %185 = vadd.xlane.f32.xlu0 %v184
  %v186 = vpop.xlane.xlu0 %185
  %v187 = vsel %vm56, %v167, 0.0
  %188 = vadd.xlane.f32.xlu0 %v187
  %v189 = vpop.xlane.xlu0 %188
  %v190 = vsel %vm56, %v168, 0.0
  %191 = vadd.xlane.f32.xlu0 %v190
  %v192 = vpop.xlane.xlu0 %191
  %v193 = vmul.f32 %v171, %v144
  %v194 = vmul.f32 %v174, %v144
  %v195 = vmul.f32 %v177, %v144
  %v196 = vmul.f32 %v180, %v144
  %v197 = vmul.f32 %v183, %v144
  %v198 = vmul.f32 %v186, %v144
  %v199 = vmul.f32 %v189, %v144
  %v200 = vmul.f32 %v192, %v144
  %v201 = vadd.f32 %v193, 1e-05
  %v202 = vadd.f32 %v194, 1e-05
  %v203 = vadd.f32 %v195, 1e-05
  %v204 = vadd.f32 %v196, 1e-05
  %v205 = vadd.f32 %v197, 1e-05
  %v206 = vadd.f32 %v198, 1e-05
  %v207 = vadd.f32 %v199, 1e-05
  %v208 = vadd.f32 %v200, 1e-05
  %v209 = vrsqrt.pop %v201
  %v210 = vmul.f32 %v209, %v201
  %v211 = vmul.f32 %v210, %v209
  %v212 = vmul.f32 0.5, %v211
  %v213 = vsub.f32 1.5, %v212
  %v214 = vmul.f32 %v209, %v213
  %vm215 = vweird.f32 %v201
  %vm216 = vweird.f32 %v209
  %vm217 = vmor %vm215, %vm216
  %v218 = vsel %vm217, %v209, %v214
  %v219 = vrsqrt.pop %v202
  %v220 = vmul.f32 %v219, %v202
  %v221 = vmul.f32 %v220, %v219
  %v222 = vmul.f32 0.5, %v221
  %v223 = vsub.f32 1.5, %v222
  %v224 = vmul.f32 %v219, %v223
  %vm225 = vweird.f32 %v202
  %vm226 = vweird.f32 %v219
  %vm227 = vmor %vm225, %vm226
  %v228 = vsel %vm227, %v219, %v224
  %v229 = vrsqrt.pop %v203
  %v230 = vmul.f32 %v229, %v203
  %v231 = vmul.f32 %v230, %v229
  %v232 = vmul.f32 0.5, %v231
  %v233 = vsub.f32 1.5, %v232
  %v234 = vmul.f32 %v229, %v233
  %vm235 = vweird.f32 %v203
  %vm236 = vweird.f32 %v229
  %vm237 = vmor %vm235, %vm236
  %v238 = vsel %vm237, %v229, %v234
  %v239 = vrsqrt.pop %v204
  %v240 = vmul.f32 %v239, %v204
  %v241 = vmul.f32 %v240, %v239
  %v242 = vmul.f32 0.5, %v241
  %v243 = vsub.f32 1.5, %v242
  %v244 = vmul.f32 %v239, %v243
  %vm245 = vweird.f32 %v204
  %vm246 = vweird.f32 %v239
  %vm247 = vmor %vm245, %vm246
  %v248 = vsel %vm247, %v239, %v244
  %v249 = vrsqrt.pop %v205
  %v250 = vmul.f32 %v249, %v205
  %v251 = vmul.f32 %v250, %v249
  %v252 = vmul.f32 0.5, %v251
  %v253 = vsub.f32 1.5, %v252
  %v254 = vmul.f32 %v249, %v253
  %vm255 = vweird.f32 %v205
  %vm256 = vweird.f32 %v249
  %vm257 = vmor %vm255, %vm256
  %v258 = vsel %vm257, %v249, %v254
  %v259 = vrsqrt.pop %v206
  %v260 = vmul.f32 %v259, %v206
  %v261 = vmul.f32 %v260, %v259
  %v262 = vmul.f32 0.5, %v261
  %v263 = vsub.f32 1.5, %v262
  %v264 = vmul.f32 %v259, %v263
  %vm265 = vweird.f32 %v206
  %vm266 = vweird.f32 %v259
  %vm267 = vmor %vm265, %vm266
  %v268 = vsel %vm267, %v259, %v264
  %v269 = vrsqrt.pop %v207
  %v270 = vmul.f32 %v269, %v207
  %v271 = vmul.f32 %v270, %v269
  %v272 = vmul.f32 0.5, %v271
  %v273 = vsub.f32 1.5, %v272
  %v274 = vmul.f32 %v269, %v273
  %vm275 = vweird.f32 %v207
  %vm276 = vweird.f32 %v269
  %vm277 = vmor %vm275, %vm276
  %v278 = vsel %vm277, %v269, %v274
  %v279 = vrsqrt.pop %v208
  %v280 = vmul.f32 %v279, %v208
  %v281 = vmul.f32 %v280, %v279
  %v282 = vmul.f32 0.5, %v281
  %v283 = vsub.f32 1.5, %v282
  %v284 = vmul.f32 %v279, %v283
  %vm285 = vweird.f32 %v208
  %vm286 = vweird.f32 %v279
  %vm287 = vmor %vm285, %vm286
  %v288 = vsel %vm287, %v279, %v284
  %v289 = vmul.f32 %v153, %v218
  %v290 = vmul.f32 %v154, %v228
  %v291 = vmul.f32 %v155, %v238
  %v292 = vmul.f32 %v156, %v248
  %v293 = vmul.f32 %v157, %v258
  %v294 = vmul.f32 %v158, %v268
  %v295 = vmul.f32 %v159, %v278
  %v296 = vmul.f32 %v160, %v288
  %v297 = vld [vmem:[%s4] sm:$0x1]
  %v299 = vperm.slane %v297, 0
  %v301 = vmul.f32 %v289, %v299
  %v302 = vmul.f32 %v290, %v299
  %v303 = vmul.f32 %v291, %v299
  %v304 = vmul.f32 %v292, %v299
  %v305 = vmul.f32 %v293, %v299
  %v306 = vmul.f32 %v294, %v299
  %v307 = vmul.f32 %v295, %v299
  %v308 = vmul.f32 %v296, %v299
  %v309 = vld [vmem:[%s5] sm:$0x1]
  %v311 = vperm.slane %v309, 0
  %v313 = vadd.f32 %v301, %v311
  %v314 = vadd.f32 %v302, %v311
  %v315 = vadd.f32 %v303, %v311
  %v316 = vadd.f32 %v304, %v311
  %v317 = vadd.f32 %v305, %v311
  %v318 = vadd.f32 %v306, %v311
  %v319 = vadd.f32 %v307, %v311
  %v320 = vadd.f32 %v308, %v311
  %321 = vst.msk [vmem:[%s6] sm:$0xff] %vm56, %v313
  %322 = vst.msk [vmem:[%s6 + $0x8] sm:$0xff] %vm56, %v314
  %323 = vst.msk [vmem:[%s6 + $0x10] sm:$0xff] %vm56, %v315
  %324 = vst.msk [vmem:[%s6 + $0x18] sm:$0xff] %vm56, %v316
  %325 = vst.msk [vmem:[%s6 + $0x20] sm:$0xff] %vm56, %v317
  %326 = vst.msk [vmem:[%s6 + $0x28] sm:$0xff] %vm56, %v318
  %327 = vst.msk [vmem:[%s6 + $0x30] sm:$0xff] %vm56, %v319
  %328 = vst.msk [vmem:[%s6 + $0x38] sm:$0xff] %vm56, %v320
  // Predicated region
  $region26: #{_lambda_.17} parent=0 // pred_check
    _
  $region27: #{_lambda_.17} parent=0 // pred_check_branch
    %330 = sbr.rel (0) target = $region29
  $region28: #{_lambda_.17} parent=0 // pred_region
    _
  $region29: #{_lambda_.17} parent=0 // pred_fallthru
    _
  // Predicated region
  $region30: #{_lambda_.17} parent=0 // pred_check
    _
  $region31: #{_lambda_.17} parent=0 // pred_check_branch
    %332 = sbr.rel (0) target = $region33
  $region32: #{_lambda_.17} parent=0 // pred_region
    _
  $region33: #{_lambda_.17} parent=0 // pred_fallthru
    _

// kernel: _lambda_.18
$region0: #{_lambda_.18}
  #allocation0 [shape = 'u32[]', space=smem, size = 0x4, offset = 0x4, fixed_abs, tag = 'smem constant byte address 0x4 - core index']
  #allocation1 [shape = 'u32[72,128]{1,0:T(1,128)}', space=vmem, size = 0x9000, scoped, tag = 'internal scratch']
  %s0 = inlined_call_operand.vmem [shape: f32[64,32], index: 0, kind: input, shape index: {}]
  %s1 = inlined_call_operand.vmem [shape: bf16[32,64], index: 1, kind: input, shape index: {}]
  %s2 = inlined_call_operand.vmem [shape: f32[1,64], index: 2, kind: input, shape index: {}]
  %s3 = inlined_call_operand.vmem [shape: f32[64,64], index: 3, kind: output, shape index: {}]
  %s4 = sld [smem:[#allocation0]]
  $region22: #{_lambda_.18} parent=0
    _
  %s6 = ssub.s32 1, %s4
  %s7 = scalar_select 0, %s6, %s4
  // Predicated region
  $region2: #{_lambda_.18} parent=0 // pred_check
    _
  $region3: #{_lambda_.18} parent=0 // pred_check_branch
    %9 = sbr.rel (0) target = $region5
  $region4: #{_lambda_.18} parent=0 // pred_region
    _
  $region5: #{_lambda_.18} parent=0 // pred_fallthru
    _
  // Predicated region
  $region6: #{_lambda_.18} parent=0 // pred_check
    _
  $region7: #{_lambda_.18} parent=0 // pred_check_branch
    %11 = sbr.rel (0) target = $region9
  $region8: #{_lambda_.18} parent=0 // pred_region
    _
  $region9: #{_lambda_.18} parent=0 // pred_fallthru
    _
  // Predicated region
  $region10: #{_lambda_.18} parent=0 // pred_check
    _
  $region11: #{_lambda_.18} parent=0 // pred_check_branch
    %13 = sbr.rel (0) target = $region13
  $region12: #{_lambda_.18} parent=0 // pred_region
    _
  $region13: #{_lambda_.18} parent=0 // pred_fallthru
    _
  %v15 = vld [vmem:[%s0] sm:$0xff]
  %v16 = vld [vmem:[%s0 + $0x8] sm:$0xff]
  %v17 = vld [vmem:[%s0 + $0x10] sm:$0xff]
  %v18 = vld [vmem:[%s0 + $0x18] sm:$0xff]
  %v19 = vld [vmem:[%s0 + $0x20] sm:$0xff]
  %v20 = vld [vmem:[%s0 + $0x28] sm:$0xff]
  %v21 = vld [vmem:[%s0 + $0x30] sm:$0xff]
  %v22 = vld [vmem:[%s0 + $0x38] sm:$0xff]
  %v23 = vpack.c.bf16 %v16, %v15
  %v24 = vpack.c.bf16 %v18, %v17
  %v25 = vpack.c.bf16 %v20, %v19
  %v26 = vpack.c.bf16 %v22, %v21
  %v27 = vld [vmem:[%s1] sm:$0xf]
  %v28 = vld [vmem:[%s1 + $0x4] sm:$0xf]
  %v29 = vld [vmem:[%s1 + $0x8] sm:$0xf]
  %v30 = vld [vmem:[%s1 + $0xc] sm:$0xf]
  %v31 = vld [vmem:[%s2] sm:$0x1]
  %v33 = vperm.slane %v31, 0
  %v39 = vunpack.c.l.b16 %v27
  %v40 = vunpack.c.l.b16 %v28
  %v41 = vunpack.c.l.b16 %v29
  %v42 = vunpack.c.l.b16 %v30
  %v43 = vpack.c.b16 %v40, %v39
  %v44 = vpack.c.b16 %v42, %v41
  %vm47 = vcmask 261120
  %v49 = vsel %vm47, %v23, 0
  %v52 = vsel %vm47, %v24, 0
  %v55 = vsel %vm47, %v25, 0
  %v58 = vsel %vm47, %v26, 0
  %60 = vmatpush.bf16.msra.mxu0 0
  %61 = vmatpush.bf16.msra.mxu0 0
  %62 = vmatpush.bf16.msra.mxu0 0
  %63 = vmatpush.bf16.msra.mxu0 0
  %64 = vmatpush.bf16.msra.mxu0 0
  %65 = vmatpush.bf16.msra.mxu0 0
  %66 = vmatpush.bf16.msra.mxu0 %v44
  %67 = vmatpush.bf16.msra.mxu0 %v43
  %68 = vmatmul.bf16.gmra.mxu0 %v49
  %v69 = vpop.f32.mrf.mxu0
  %v70 = vadd.f32 %v33, %v69
  %v71 = vpop.f32.mrf.mxu0
  %v72 = vadd.f32 %v33, %v71
  %73 = vmatmul.bf16.gmra.mxu0 %v52
  %v74 = vpop.f32.mrf.mxu0
  %v75 = vadd.f32 %v33, %v74
  %v76 = vpop.f32.mrf.mxu0
  %v77 = vadd.f32 %v33, %v76
  %78 = vmatmul.bf16.gmra.mxu0 %v55
  %v79 = vpop.f32.mrf.mxu0
  %v80 = vadd.f32 %v33, %v79
  %v81 = vpop.f32.mrf.mxu0
  %v82 = vadd.f32 %v33, %v81
  %83 = vmatmul.bf16.gmra.mxu0 %v58
  %v84 = vpop.f32.mrf.mxu0
  %v85 = vadd.f32 %v33, %v84
  %v86 = vpop.f32.mrf.mxu0
  %v87 = vadd.f32 %v33, %v86
  %88 = vdwg.mxu0
  %v89 = vmul.f32 %v70, %v70
  %v90 = vmul.f32 %v72, %v72
  %v91 = vmul.f32 %v75, %v75
  %v92 = vmul.f32 %v77, %v77
  %v93 = vmul.f32 %v80, %v80
  %v94 = vmul.f32 %v82, %v82
  %v95 = vmul.f32 %v85, %v85
  %v96 = vmul.f32 %v87, %v87
  %v97 = vmul.f32 %v70, %v89
  %v98 = vmul.f32 %v72, %v90
  %v99 = vmul.f32 %v75, %v91
  %v100 = vmul.f32 %v77, %v92
  %v101 = vmul.f32 %v80, %v93
  %v102 = vmul.f32 %v82, %v94
  %v103 = vmul.f32 %v85, %v95
  %v104 = vmul.f32 %v87, %v96
  %v105 = vmul.f32 %v97, 0.044715
  %v106 = vmul.f32 %v98, 0.044715
  %v107 = vmul.f32 %v99, 0.044715
  %v108 = vmul.f32 %v100, 0.044715
  %v109 = vmul.f32 %v101, 0.044715
  %v110 = vmul.f32 %v102, 0.044715
  %v111 = vmul.f32 %v103, 0.044715
  %v112 = vmul.f32 %v104, 0.044715
  %v113 = vadd.f32 %v70, %v105
  %v114 = vadd.f32 %v72, %v106
  %v115 = vadd.f32 %v75, %v107
  %v116 = vadd.f32 %v77, %v108
  %v117 = vadd.f32 %v80, %v109
  %v118 = vadd.f32 %v82, %v110
  %v119 = vadd.f32 %v85, %v111
  %v120 = vadd.f32 %v87, %v112
  %v121 = vmul.f32 %v113, 0.7978846
  %v122 = vmul.f32 %v114, 0.7978846
  %v123 = vmul.f32 %v115, 0.7978846
  %v124 = vmul.f32 %v116, 0.7978846
  %v125 = vmul.f32 %v117, 0.7978846
  %v126 = vmul.f32 %v118, 0.7978846
  %v127 = vmul.f32 %v119, 0.7978846
  %v128 = vmul.f32 %v120, 0.7978846
  %v129 = vtanh.pop %v121
  %v130 = vtanh.pop %v122
  %v131 = vtanh.pop %v123
  %v132 = vtanh.pop %v124
  %v133 = vtanh.pop %v125
  %v134 = vtanh.pop %v126
  %v135 = vtanh.pop %v127
  %v136 = vtanh.pop %v128
  %v137 = vadd.f32 %v129, 1.0
  %v138 = vadd.f32 %v130, 1.0
  %v139 = vadd.f32 %v131, 1.0
  %v140 = vadd.f32 %v132, 1.0
  %v141 = vadd.f32 %v133, 1.0
  %v142 = vadd.f32 %v134, 1.0
  %v143 = vadd.f32 %v135, 1.0
  %v144 = vadd.f32 %v136, 1.0
  %v145 = vmul.f32 %v137, 0.5
  %v146 = vmul.f32 %v138, 0.5
  %v147 = vmul.f32 %v139, 0.5
  %v148 = vmul.f32 %v140, 0.5
  %v149 = vmul.f32 %v141, 0.5
  %v150 = vmul.f32 %v142, 0.5
  %v151 = vmul.f32 %v143, 0.5
  %v152 = vmul.f32 %v144, 0.5
  %v153 = vmul.f32 %v70, %v145
  %v154 = vmul.f32 %v72, %v146
  %v155 = vmul.f32 %v75, %v147
  %v156 = vmul.f32 %v77, %v148
  %v157 = vmul.f32 %v80, %v149
  %v158 = vmul.f32 %v82, %v150
  %v159 = vmul.f32 %v85, %v151
  %v160 = vmul.f32 %v87, %v152
  %vm161 = vcmask 523264
  %162 = vst.msk [vmem:[%s3] sm:$0xff] %vm161, %v153
  %163 = vst.msk [vmem:[%s3 + $0x8] sm:$0xff] %vm161, %v154
  %164 = vst.msk [vmem:[%s3 + $0x10] sm:$0xff] %vm161, %v155
  %165 = vst.msk [vmem:[%s3 + $0x18] sm:$0xff] %vm161, %v156
  %166 = vst.msk [vmem:[%s3 + $0x20] sm:$0xff] %vm161, %v157
  %167 = vst.msk [vmem:[%s3 + $0x28] sm:$0xff] %vm161, %v158
  %168 = vst.msk [vmem:[%s3 + $0x30] sm:$0xff] %vm161, %v159
  %169 = vst.msk [vmem:[%s3 + $0x38] sm:$0xff] %vm161, %v160
  // Predicated region
  $region14: #{_lambda_.18} parent=0 // pred_check
    _
  $region15: #{_lambda_.18} parent=0 // pred_check_branch
    %171 = sbr.rel (0) target = $region17
  $region16: #{_lambda_.18} parent=0 // pred_region
    _
  $region17: #{_lambda_.18} parent=0 // pred_fallthru
    _
  // Predicated region
  $region18: #{_lambda_.18} parent=0 // pred_check
    _
  $region19: #{_lambda_.18} parent=0 // pred_check_branch
    %173 = sbr.rel (0) target = $region21
  $region20: #{_lambda_.18} parent=0 // pred_region
    _
  $region21: #{_lambda_.18} parent=0 // pred_fallthru
    _

// kernel: _lambda_.25
$region0: #{_lambda_.25}
  #allocation0 [shape = 'u32[]', space=smem, size = 0x4, offset = 0x4, fixed_abs, tag = 'smem constant byte address 0x4 - core index']
  #allocation1 [shape = 'u32[72,128]{1,0:T(1,128)}', space=vmem, size = 0x9000, scoped, tag = 'internal scratch']
  %s0 = inlined_call_operand.vmem [shape: f32[8,8,32], index: 0, kind: input, shape index: {}]
  %s1 = inlined_call_operand.vmem [shape: f32[8,8,1], index: 1, kind: input, shape index: {}]
  %s2 = inlined_call_operand.vmem [shape: f32[8,32], index: 2, kind: output, shape index: {}]
  %s3 = sld [smem:[#allocation0]]
  $region18: #{_lambda_.25} parent=0
    _
  %s5 = ssub.s32 1, %s3
  %s6 = scalar_select 0, %s5, %s3
  // Predicated region
  $region2: #{_lambda_.25} parent=0 // pred_check
    _
  $region3: #{_lambda_.25} parent=0 // pred_check_branch
    %8 = sbr.rel (0) target = $region5
  $region4: #{_lambda_.25} parent=0 // pred_region
    _
  $region5: #{_lambda_.25} parent=0 // pred_fallthru
    _
  // Predicated region
  $region6: #{_lambda_.25} parent=0 // pred_check
    _
  $region7: #{_lambda_.25} parent=0 // pred_check_branch
    %10 = sbr.rel (0) target = $region9
  $region8: #{_lambda_.25} parent=0 // pred_region
    _
  $region9: #{_lambda_.25} parent=0 // pred_fallthru
    _
  %v11 = vld [vmem:[%s0] sm:$0xff]
  %v12 = vld [vmem:[%s0 + $0x8] sm:$0xff]
  %v13 = vld [vmem:[%s0 + $0x10] sm:$0xff]
  %v14 = vld [vmem:[%s0 + $0x18] sm:$0xff]
  %v15 = vld [vmem:[%s0 + $0x20] sm:$0xff]
  %v16 = vld [vmem:[%s0 + $0x28] sm:$0xff]
  %v17 = vld [vmem:[%s0 + $0x30] sm:$0xff]
  %v18 = vld [vmem:[%s0 + $0x38] sm:$0xff]
  %v19 = vld [vmem:[%s1] sm:$0xff]
  %v20 = vld [vmem:[%s1 + $0x8] sm:$0xff]
  %v21 = vld [vmem:[%s1 + $0x10] sm:$0xff]
  %v22 = vld [vmem:[%s1 + $0x18] sm:$0xff]
  %v23 = vld [vmem:[%s1 + $0x20] sm:$0xff]
  %v24 = vld [vmem:[%s1 + $0x28] sm:$0xff]
  %v25 = vld [vmem:[%s1 + $0x30] sm:$0xff]
  %v26 = vld [vmem:[%s1 + $0x38] sm:$0xff]
  %28 = vset.pattern.permute.xlu0 0
  %29 = vperm.xlu0 %28, %v19
  %v30 = vpop.permute.xlu0 %29
  %33 = vset.pattern.permute.xlu0 0
  %34 = vperm.xlu0 %33, %v20
  %v35 = vpop.permute.xlu0 %34
  %38 = vset.pattern.permute.xlu0 0
  %39 = vperm.xlu0 %38, %v21
  %v40 = vpop.permute.xlu0 %39
  %43 = vset.pattern.permute.xlu0 0
  %44 = vperm.xlu0 %43, %v22
  %v45 = vpop.permute.xlu0 %44
  %48 = vset.pattern.permute.xlu0 0
  %49 = vperm.xlu0 %48, %v23
  %v50 = vpop.permute.xlu0 %49
  %53 = vset.pattern.permute.xlu0 0
  %54 = vperm.xlu0 %53, %v24
  %v55 = vpop.permute.xlu0 %54
  %58 = vset.pattern.permute.xlu0 0
  %59 = vperm.xlu0 %58, %v25
  %v60 = vpop.permute.xlu0 %59
  %63 = vset.pattern.permute.xlu0 0
  %64 = vperm.xlu0 %63, %v26
  %v65 = vpop.permute.xlu0 %64
  %v67 = vmul.f32 %v11, %v30
  %v68 = vmul.f32 %v12, %v35
  %v69 = vmul.f32 %v13, %v40
  %v70 = vmul.f32 %v14, %v45
  %v71 = vmul.f32 %v15, %v50
  %v72 = vmul.f32 %v16, %v55
  %v73 = vmul.f32 %v17, %v60
  %v74 = vmul.f32 %v18, %v65
  %vm75 = vcmask 261120
  %v76 = vsel %vm75, %v67, 0.0
  %v77 = vrot.slane %v76, 4
  %v78 = vadd.f32 %v76, %v77
  %v79 = vrot.slane %v78, 2
  %v80 = vadd.f32 %v78, %v79
  %v81 = vrot.slane %v80, 1
  %v82 = vadd.f32 %v80, %v81
  %v83 = vsel %vm75, %v68, 0.0
  %v84 = vrot.slane %v83, 4
  %v85 = vadd.f32 %v83, %v84
  %v86 = vrot.slane %v85, 2
  %v87 = vadd.f32 %v85, %v86
  %v88 = vrot.slane %v87, 1
  %v89 = vadd.f32 %v87, %v88
  %v90 = vsel %vm75, %v69, 0.0
  %v91 = vrot.slane %v90, 4
  %v92 = vadd.f32 %v90, %v91
  %v93 = vrot.slane %v92, 2
  %v94 = vadd.f32 %v92, %v93
  %v95 = vrot.slane %v94, 1
  %v96 = vadd.f32 %v94, %v95
  %v97 = vsel %vm75, %v70, 0.0
  %v98 = vrot.slane %v97, 4
  %v99 = vadd.f32 %v97, %v98
  %v100 = vrot.slane %v99, 2
  %v101 = vadd.f32 %v99, %v100
  %v102 = vrot.slane %v101, 1
  %v103 = vadd.f32 %v101, %v102
  %v104 = vsel %vm75, %v71, 0.0
  %v105 = vrot.slane %v104, 4
  %v106 = vadd.f32 %v104, %v105
  %v107 = vrot.slane %v106, 2
  %v108 = vadd.f32 %v106, %v107
  %v109 = vrot.slane %v108, 1
  %v110 = vadd.f32 %v108, %v109
  %v111 = vsel %vm75, %v72, 0.0
  %v112 = vrot.slane %v111, 4
  %v113 = vadd.f32 %v111, %v112
  %v114 = vrot.slane %v113, 2
  %v115 = vadd.f32 %v113, %v114
  %v116 = vrot.slane %v115, 1
  %v117 = vadd.f32 %v115, %v116
  %v118 = vsel %vm75, %v73, 0.0
  %v119 = vrot.slane %v118, 4
  %v120 = vadd.f32 %v118, %v119
  %v121 = vrot.slane %v120, 2
  %v122 = vadd.f32 %v120, %v121
  %v123 = vrot.slane %v122, 1
  %v124 = vadd.f32 %v122, %v123
  %v125 = vsel %vm75, %v74, 0.0
  %v126 = vrot.slane %v125, 4
  %v127 = vadd.f32 %v125, %v126
  %v128 = vrot.slane %v127, 2
  %v129 = vadd.f32 %v127, %v128
  %v130 = vrot.slane %v129, 1
  %v131 = vadd.f32 %v129, %v130
  %vm132 = vcmask 7168
  %v133 = vsel %vm132, %v19, 0.0
  %v134 = vrot.slane %v133, 4
  %v135 = vadd.f32 %v133, %v134
  %v136 = vrot.slane %v135, 2
  %v137 = vadd.f32 %v135, %v136
  %v138 = vrot.slane %v137, 1
  %v139 = vadd.f32 %v137, %v138
  %v140 = vsel %vm132, %v20, 0.0
  %v141 = vrot.slane %v140, 4
  %v142 = vadd.f32 %v140, %v141
  %v143 = vrot.slane %v142, 2
  %v144 = vadd.f32 %v142, %v143
  %v145 = vrot.slane %v144, 1
  %v146 = vadd.f32 %v144, %v145
  %v147 = vsel %vm132, %v21, 0.0
  %v148 = vrot.slane %v147, 4
  %v149 = vadd.f32 %v147, %v148
  %v150 = vrot.slane %v149, 2
  %v151 = vadd.f32 %v149, %v150
  %v152 = vrot.slane %v151, 1
  %v153 = vadd.f32 %v151, %v152
  %v154 = vsel %vm132, %v22, 0.0
  %v155 = vrot.slane %v154, 4
  %v156 = vadd.f32 %v154, %v155
  %v157 = vrot.slane %v156, 2
  %v158 = vadd.f32 %v156, %v157
  %v159 = vrot.slane %v158, 1
  %v160 = vadd.f32 %v158, %v159
  %v161 = vsel %vm132, %v23, 0.0
  %v162 = vrot.slane %v161, 4
  %v163 = vadd.f32 %v161, %v162
  %v164 = vrot.slane %v163, 2
  %v165 = vadd.f32 %v163, %v164
  %v166 = vrot.slane %v165, 1
  %v167 = vadd.f32 %v165, %v166
  %v168 = vsel %vm132, %v24, 0.0
  %v169 = vrot.slane %v168, 4
  %v170 = vadd.f32 %v168, %v169
  %v171 = vrot.slane %v170, 2
  %v172 = vadd.f32 %v170, %v171
  %v173 = vrot.slane %v172, 1
  %v174 = vadd.f32 %v172, %v173
  %v175 = vsel %vm132, %v25, 0.0
  %v176 = vrot.slane %v175, 4
  %v177 = vadd.f32 %v175, %v176
  %v178 = vrot.slane %v177, 2
  %v179 = vadd.f32 %v177, %v178
  %v180 = vrot.slane %v179, 1
  %v181 = vadd.f32 %v179, %v180
  %v182 = vsel %vm132, %v26, 0.0
  %v183 = vrot.slane %v182, 4
  %v184 = vadd.f32 %v182, %v183
  %v185 = vrot.slane %v184, 2
  %v186 = vadd.f32 %v184, %v185
  %v187 = vrot.slane %v186, 1
  %v188 = vadd.f32 %v186, %v187
  %v189 = vmax.f32 %v139, 1e-09
  %v190 = vmax.f32 %v146, 1e-09
  %v191 = vmax.f32 %v153, 1e-09
  %v192 = vmax.f32 %v160, 1e-09
  %v193 = vmax.f32 %v167, 1e-09
  %v194 = vmax.f32 %v174, 1e-09
  %v195 = vmax.f32 %v181, 1e-09
  %v196 = vmax.f32 %v188, 1e-09
  %198 = vset.pattern.permute.xlu0 0
  %199 = vperm.xlu0 %198, %v189
  %v200 = vpop.permute.xlu0 %199
  %203 = vset.pattern.permute.xlu0 0
  %204 = vperm.xlu0 %203, %v190
  %v205 = vpop.permute.xlu0 %204
  %208 = vset.pattern.permute.xlu0 0
  %209 = vperm.xlu0 %208, %v191
  %v210 = vpop.permute.xlu0 %209
  %213 = vset.pattern.permute.xlu0 0
  %214 = vperm.xlu0 %213, %v192
  %v215 = vpop.permute.xlu0 %214
  %218 = vset.pattern.permute.xlu0 0
  %219 = vperm.xlu0 %218, %v193
  %v220 = vpop.permute.xlu0 %219
  %223 = vset.pattern.permute.xlu0 0
  %224 = vperm.xlu0 %223, %v194
  %v225 = vpop.permute.xlu0 %224
  %228 = vset.pattern.permute.xlu0 0
  %229 = vperm.xlu0 %228, %v195
  %v230 = vpop.permute.xlu0 %229
  %233 = vset.pattern.permute.xlu0 0
  %234 = vperm.xlu0 %233, %v196
  %v235 = vpop.permute.xlu0 %234
  %v237 = vrcp.pop %v200
  %v238 = vmul.f32 %v200, %v237
  %v239 = vsub.f32 1.0, %v238
  %v240 = vmul.f32 %v237, %v239
  %v241 = vadd.f32 %v237, %v240
  %vm242 = vweird.f32 %v200
  %vm243 = vweird.f32 %v237
  %vm244 = vmor %vm242, %vm243
  %v245 = vsel %vm244, %v237, %v241
  %v246 = vand.u32 2147483647, %v200
  %vm247 = vcmp.eq.f32.partialorder %v246, 8.507059e+37
  %v248 = vand.u32 %v200, 2147483648
  %v249 = vor.u32 1.1754944e-38, %v248
  %v250 = vsel %vm247, %v249, %v245
  %v251 = vmul.f32 %v82, %v250
  %v252 = vrcp.pop %v205
  %v253 = vmul.f32 %v205, %v252
  %v254 = vsub.f32 1.0, %v253
  %v255 = vmul.f32 %v252, %v254
  %v256 = vadd.f32 %v252, %v255
  %vm257 = vweird.f32 %v205
  %vm258 = vweird.f32 %v252
  %vm259 = vmor %vm257, %vm258
  %v260 = vsel %vm259, %v252, %v256
  %v261 = vand.u32 2147483647, %v205
  %vm262 = vcmp.eq.f32.partialorder %v261, 8.507059e+37
  %v263 = vand.u32 %v205, 2147483648
  %v264 = vor.u32 1.1754944e-38, %v263
  %v265 = vsel %vm262, %v264, %v260
  %v266 = vmul.f32 %v89, %v265
  %v267 = vrcp.pop %v210
  %v268 = vmul.f32 %v210, %v267
  %v269 = vsub.f32 1.0, %v268
  %v270 = vmul.f32 %v267, %v269
  %v271 = vadd.f32 %v267, %v270
  %vm272 = vweird.f32 %v210
  %vm273 = vweird.f32 %v267
  %vm274 = vmor %vm272, %vm273
  %v275 = vsel %vm274, %v267, %v271
  %v276 = vand.u32 2147483647, %v210
  %vm277 = vcmp.eq.f32.partialorder %v276, 8.507059e+37
  %v278 = vand.u32 %v210, 2147483648
  %v279 = vor.u32 1.1754944e-38, %v278
  %v280 = vsel %vm277, %v279, %v275
  %v281 = vmul.f32 %v96, %v280
  %v282 = vrcp.pop %v215
  %v283 = vmul.f32 %v215, %v282
  %v284 = vsub.f32 1.0, %v283
  %v285 = vmul.f32 %v282, %v284
  %v286 = vadd.f32 %v282, %v285
  %vm287 = vweird.f32 %v215
  %vm288 = vweird.f32 %v282
  %vm289 = vmor %vm287, %vm288
  %v290 = vsel %vm289, %v282, %v286
  %v291 = vand.u32 2147483647, %v215
  %vm292 = vcmp.eq.f32.partialorder %v291, 8.507059e+37
  %v293 = vand.u32 %v215, 2147483648
  %v294 = vor.u32 1.1754944e-38, %v293
  %v295 = vsel %vm292, %v294, %v290
  %v296 = vmul.f32 %v103, %v295
  %v297 = vrcp.pop %v220
  %v298 = vmul.f32 %v220, %v297
  %v299 = vsub.f32 1.0, %v298
  %v300 = vmul.f32 %v297, %v299
  %v301 = vadd.f32 %v297, %v300
  %vm302 = vweird.f32 %v220
  %vm303 = vweird.f32 %v297
  %vm304 = vmor %vm302, %vm303
  %v305 = vsel %vm304, %v297, %v301
  %v306 = vand.u32 2147483647, %v220
  %vm307 = vcmp.eq.f32.partialorder %v306, 8.507059e+37
  %v308 = vand.u32 %v220, 2147483648
  %v309 = vor.u32 1.1754944e-38, %v308
  %v310 = vsel %vm307, %v309, %v305
  %v311 = vmul.f32 %v110, %v310
  %v312 = vrcp.pop %v225
  %v313 = vmul.f32 %v225, %v312
  %v314 = vsub.f32 1.0, %v313
  %v315 = vmul.f32 %v312, %v314
  %v316 = vadd.f32 %v312, %v315
  %vm317 = vweird.f32 %v225
  %vm318 = vweird.f32 %v312
  %vm319 = vmor %vm317, %vm318
  %v320 = vsel %vm319, %v312, %v316
  %v321 = vand.u32 2147483647, %v225
  %vm322 = vcmp.eq.f32.partialorder %v321, 8.507059e+37
  %v323 = vand.u32 %v225, 2147483648
  %v324 = vor.u32 1.1754944e-38, %v323
  %v325 = vsel %vm322, %v324, %v320
  %v326 = vmul.f32 %v117, %v325
  %v327 = vrcp.pop %v230
  %v328 = vmul.f32 %v230, %v327
  %v329 = vsub.f32 1.0, %v328
  %v330 = vmul.f32 %v327, %v329
  %v331 = vadd.f32 %v327, %v330
  %vm332 = vweird.f32 %v230
  %vm333 = vweird.f32 %v327
  %vm334 = vmor %vm332, %vm333
  %v335 = vsel %vm334, %v327, %v331
  %v336 = vand.u32 2147483647, %v230
  %vm337 = vcmp.eq.f32.partialorder %v336, 8.507059e+37
  %v338 = vand.u32 %v230, 2147483648
  %v339 = vor.u32 1.1754944e-38, %v338
  %v340 = vsel %vm337, %v339, %v335
  %v341 = vmul.f32 %v124, %v340
  %v342 = vrcp.pop %v235
  %v343 = vmul.f32 %v235, %v342
  %v344 = vsub.f32 1.0, %v343
  %v345 = vmul.f32 %v342, %v344
  %v346 = vadd.f32 %v342, %v345
  %vm347 = vweird.f32 %v235
  %vm348 = vweird.f32 %v342
  %vm349 = vmor %vm347, %vm348
  %v350 = vsel %vm349, %v342, %v346
  %v351 = vand.u32 2147483647, %v235
  %vm352 = vcmp.eq.f32.partialorder %v351, 8.507059e+37
  %v353 = vand.u32 %v235, 2147483648
  %v354 = vor.u32 1.1754944e-38, %v353
  %v355 = vsel %vm352, %v354, %v350
  %v356 = vmul.f32 %v131, %v355
  %v357 = vmul.f32 %v251, %v251
  %v358 = vmul.f32 %v266, %v266
  %v359 = vmul.f32 %v281, %v281
  %v360 = vmul.f32 %v296, %v296
  %v361 = vmul.f32 %v311, %v311
  %v362 = vmul.f32 %v326, %v326
  %v363 = vmul.f32 %v341, %v341
  %v364 = vmul.f32 %v356, %v356
  %vm373 = vcmask 1041409
  %v374 = vsel %vm373, %v358, %v357
  %vm375 = vcmask 1042434
  %v376 = vsel %vm375, %v359, %v374
  %vm377 = vcmask 1043459
  %v378 = vsel %vm377, %v360, %v376
  %vm379 = vcmask 1044484
  %v380 = vsel %vm379, %v361, %v378
  %vm381 = vcmask 1045509
  %v382 = vsel %vm381, %v362, %v380
  %vm383 = vcmask 1046534
  %v384 = vsel %vm383, %v363, %v382
  %vm385 = vcmask 1047559
  %v386 = vsel %vm385, %v364, %v384
  %v388 = vsel %vm75, %v386, 0.0
  %389 = vadd.xlane.f32.xlu0 %v388
  %v390 = vpop.xlane.xlu0 %389
  %v391 = vmax.f32 %v390, 1e-24
  %v392 = vrsqrt.pop %v391
  %v393 = vmul.f32 %v392, %v391
  %v394 = vmul.f32 %v393, %v392
  %v395 = vmul.f32 0.5, %v394
  %v396 = vsub.f32 1.5, %v395
  %v397 = vmul.f32 %v392, %v396
  %vm398 = vweird.f32 %v391
  %vm399 = vweird.f32 %v392
  %vm400 = vmor %vm398, %vm399
  %v401 = vsel %vm400, %v392, %v397
  %v403 = vrot.slane %v401, 1
  %v404 = vrot.slane %v401, 2
  %v405 = vrot.slane %v401, 3
  %v406 = vrot.slane %v401, 4
  %v407 = vrot.slane %v401, 5
  %v408 = vrot.slane %v401, 6
  %v409 = vrot.slane %v401, 7
  %v418 = vmul.f32 %v251, %v401
  %v419 = vmul.f32 %v266, %v403
  %v420 = vmul.f32 %v281, %v404
  %v421 = vmul.f32 %v296, %v405
  %v422 = vmul.f32 %v311, %v406
  %v423 = vmul.f32 %v326, %v407
  %v424 = vmul.f32 %v341, %v408
  %v425 = vmul.f32 %v356, %v409
  %v434 = vrot.slane %v419, 7
  %v435 = vsel %vm373, %v434, %v418
  %v436 = vrot.slane %v420, 6
  %v437 = vsel %vm375, %v436, %v435
  %v438 = vrot.slane %v421, 5
  %v439 = vsel %vm377, %v438, %v437
  %v440 = vrot.slane %v422, 4
  %v441 = vsel %vm379, %v440, %v439
  %v442 = vrot.slane %v423, 3
  %v443 = vsel %vm381, %v442, %v441
  %v444 = vrot.slane %v424, 2
  %v445 = vsel %vm383, %v444, %v443
  %v446 = vrot.slane %v425, 1
  %v447 = vsel %vm385, %v446, %v445
  %449 = vst.msk [vmem:[%s2] sm:$0xff] %vm75, %v447
  // Predicated region
  $region10: #{_lambda_.25} parent=0 // pred_check
    _
  $region11: #{_lambda_.25} parent=0 // pred_check_branch
    %451 = sbr.rel (0) target = $region13
  $region12: #{_lambda_.25} parent=0 // pred_region
    _
  $region13: #{_lambda_.25} parent=0 // pred_fallthru
    _
  // Predicated region
  $region14: #{_lambda_.25} parent=0 // pred_check
    _
  $region15: #{_lambda_.25} parent=0 // pred_check_branch
    %453 = sbr.rel (0) target = $region17
  $region16: #{_lambda_.25} parent=0 // pred_region
    _
  $region17: #{_lambda_.25} parent=0 // pred_fallthru
    _

// kernel: squeeze.23
$region0: #{squeeze.23}
  %s0 = inlined_call_operand.vmem [shape: f32[4], index: 0, kind: input, shape index: {}]
  %s1 = inlined_call_operand.hbm [shape: f32[2,2], index: 1, kind: output, shape index: {}]
  $region1: #{squeeze.23} parent=0
    #allocation0 [shape = 'u8[1024]{0}', space=vmem, size = 0x400, scoped, tag = 'operand span for operand 1']
    #allocation1 [shape = 's32[1]{0}', space=sflag, size = 0x4, scoped, tag = 'scoped memory for squeeze.23']
    #allocation2 [shape = 'u8[4096]{0}', space=vmem, size = 0x1000, scoped, tag = 'scoped mem for output reshape']
    #allocation3 [shape = 'u8[4096]{0}', space=vmem, size = 0x1000, scoped, tag = 'scoped mem for input reshape']
    %2 = vsyncpa [#allocation1], 0
    %s4 = ssub.s32 2, 1
    %v5 = vld [vmem:[%s0] sm:%s4]
    %6 = vst [vmem:[#allocation3] sm:%s4] %v5
    %v7 = vld [vmem:[#allocation3] sm:$0x1]
    %vm8 = vcmask 15360
    %9 = vst.msk [vmem:[#allocation2] sm:$0x1] %vm8, %v7
    %v10 = vld [vmem:[#allocation3] sm:$0x1]
    %11 = vrot.lane.b32.xlu0 %v10, 126
    %v12 = vpop.permute.xlu0 %11
    %vm13 = vcmask 15360
    %s14 = scalar_lea.vmem [#allocation2], 1
    %15 = vst.msk [vmem:[%s14] sm:$0x1] %vm13, %v12
    %s17 = ssub.s32 4, 1
    %v18 = vld [vmem:[#allocation2] sm:%s17]
    %s20 = ssub.s32 4, 1
    %21 = vst [vmem:[#allocation0] sm:%s20] %v18
    %23 = vsyncadd [#allocation1], 0
    %s25 = sshll.u32 [#allocation0], 4
    %s26 = int_to_ptr.vmem [resolvable:$true] %s25
    %s27 = sshll.u32 %s1, 4
    %s28 = int_to_ptr.hbm [resolvable:$true] %s27
    %30 = dma.vmem_to_hbm [thread:$0]  %s26, 32, %s28, [#allocation1]
    %32 = dma.done [#allocation1], 32
    %33 = vsyncpa [#allocation1], 1

// kernel: _lambda_.27
$region0: #{_lambda_.27}
  #allocation0 [shape = 'u32[]', space=smem, size = 0x4, offset = 0x4, fixed_abs, tag = 'smem constant byte address 0x4 - core index']
  #allocation1 [shape = 'u32[72,128]{1,0:T(1,128)}', space=vmem, size = 0x9000, scoped, tag = 'internal scratch']
  #allocation2 [shape = 'f32[1,1]{1,0:T(1,128)S(1)}', space=vmem, size = 0x200, scoped, tag = 'scoped memory for _lambda_.27']
  %s0 = inlined_call_operand.vmem [shape: f32[8,32], index: 0, kind: input, shape index: {}]
  %s1 = inlined_call_operand.vmem [shape: f32[8,32], index: 1, kind: input, shape index: {}]
  %s2 = inlined_call_operand.vmem [shape: bf16[32,32], index: 2, kind: input, shape index: {}]
  %s3 = inlined_call_operand.vmem [shape: f32[1,32], index: 3, kind: input, shape index: {}]
  %s4 = inlined_call_operand.vmem [shape: f32[1,32], index: 4, kind: input, shape index: {}]
  %s5 = inlined_call_operand.<no memory space> [shape: f32[1,1], index: 5, kind: input, shape index: {}]
  %s6 = inlined_call_operand.vmem [shape: f32[8,1], index: 6, kind: output, shape index: {}]
  %s7 = sld [smem:[#allocation0]]
  $region34: #{_lambda_.27} parent=0
    _
  %s9 = ssub.s32 1, %s7
  %s10 = scalar_select 0, %s9, %s7
  %v11 = vstv %s5
  %12 = vst [vmem:[#allocation2] sm:$0x1] %v11
  // Predicated region
  $region2: #{_lambda_.27} parent=0 // pred_check
    _
  $region3: #{_lambda_.27} parent=0 // pred_check_branch
    %14 = sbr.rel (0) target = $region5
  $region4: #{_lambda_.27} parent=0 // pred_region
    _
  $region5: #{_lambda_.27} parent=0 // pred_fallthru
    _
  // Predicated region
  $region6: #{_lambda_.27} parent=0 // pred_check
    _
  $region7: #{_lambda_.27} parent=0 // pred_check_branch
    %16 = sbr.rel (0) target = $region9
  $region8: #{_lambda_.27} parent=0 // pred_region
    _
  $region9: #{_lambda_.27} parent=0 // pred_fallthru
    _
  // Predicated region
  $region10: #{_lambda_.27} parent=0 // pred_check
    _
  $region11: #{_lambda_.27} parent=0 // pred_check_branch
    %18 = sbr.rel (0) target = $region13
  $region12: #{_lambda_.27} parent=0 // pred_region
    _
  $region13: #{_lambda_.27} parent=0 // pred_fallthru
    _
  // Predicated region
  $region14: #{_lambda_.27} parent=0 // pred_check
    _
  $region15: #{_lambda_.27} parent=0 // pred_check_branch
    %20 = sbr.rel (0) target = $region17
  $region16: #{_lambda_.27} parent=0 // pred_region
    _
  $region17: #{_lambda_.27} parent=0 // pred_fallthru
    _
  // Predicated region
  $region18: #{_lambda_.27} parent=0 // pred_check
    _
  $region19: #{_lambda_.27} parent=0 // pred_check_branch
    %22 = sbr.rel (0) target = $region21
  $region20: #{_lambda_.27} parent=0 // pred_region
    _
  $region21: #{_lambda_.27} parent=0 // pred_fallthru
    _
  // Predicated region
  $region22: #{_lambda_.27} parent=0 // pred_check
    _
  $region23: #{_lambda_.27} parent=0 // pred_check_branch
    %24 = sbr.rel (0) target = $region25
  $region24: #{_lambda_.27} parent=0 // pred_region
    _
  $region25: #{_lambda_.27} parent=0 // pred_fallthru
    _
  %v26 = vld [vmem:[%s0] sm:$0xff]
  %v27 = vld [vmem:[%s1] sm:$0xff]
  %v28 = vmul.f32 %v26, %v27
  %v29 = vpack.c.bf16 %v28, %v28
  %v30 = vld [vmem:[%s2] sm:$0xf]
  %v31 = vld [vmem:[%s2 + $0x4] sm:$0xf]
  %v32 = vld [vmem:[%s2 + $0x8] sm:$0xf]
  %v33 = vld [vmem:[%s2 + $0xc] sm:$0xf]
  %v34 = vld [vmem:[%s3] sm:$0x1]
  %v36 = vperm.slane %v34, 0
  %v42 = vunpack.c.l.b16 %v30
  %v43 = vunpack.c.l.b16 %v31
  %v44 = vunpack.c.l.b16 %v32
  %v45 = vunpack.c.l.b16 %v33
  %v46 = vpack.c.b16 %v43, %v42
  %v47 = vpack.c.b16 %v45, %v44
  %vm50 = vcmask 261120
  %v52 = vsel %vm50, %v29, 0
  %54 = vmatpush.bf16.msra.mxu0 0
  %55 = vmatpush.bf16.msra.mxu0 0
  %56 = vmatpush.bf16.msra.mxu0 0
  %57 = vmatpush.bf16.msra.mxu0 0
  %58 = vmatpush.bf16.msra.mxu0 0
  %59 = vmatpush.bf16.msra.mxu0 0
  %60 = vmatpush.bf16.msra.mxu0 %v47
  %61 = vmatpush.bf16.msra.mxu0 %v46
  %62 = vmatmul.bf16.gmra.mxu0 %v52
  %v63 = vpop.f32.mrf.mxu0
  %v64 = vadd.f32 %v36, %v63
  %v65 = vpop.f32.mrf.mxu0
  %66 = vdwg.mxu0
  %v67 = vtanh.pop %v64
  %v68 = vld [vmem:[%s4] sm:$0x1]
  %v70 = vperm.slane %v68, 0
  %v72 = vmul.f32 %v67, %v70
  %v73 = vsel %vm50, %v72, 0.0
  %74 = vadd.xlane.f32.xlu0 %v73
  %v75 = vpop.xlane.xlu0 %74
  %v76 = vld [vmem:[#allocation2] sm:$0x1]
  %v78 = vperm.slane %v76, 0
  %v80 = vadd.f32 %v75, %v78
  %v81 = vxor.u32 %v80, 2147483648
  %v82 = vmul.f32 %v81, 1.442695
  %v83 = vpow.pop %v82
  %v84 = vadd.f32 %v83, 1.0
  %v85 = vrcp.pop %v84
  %v86 = vmul.f32 %v84, %v85
  %v87 = vsub.f32 1.0, %v86
  %v88 = vmul.f32 %v85, %v87
  %v89 = vadd.f32 %v85, %v88
  %vm90 = vweird.f32 %v84
  %vm91 = vweird.f32 %v85
  %vm92 = vmor %vm90, %vm91
  %v93 = vsel %vm92, %v85, %v89
  %v94 = vand.u32 2147483647, %v84
  %vm95 = vcmp.eq.f32.partialorder %v94, 8.507059e+37
  %v96 = vand.u32 %v84, 2147483648
  %v97 = vor.u32 1.1754944e-38, %v96
  %v98 = vsel %vm95, %v97, %v93
  %v99 = vmul.f32 1.0, %v98
  %vm100 = vcmask 7168
  %101 = vst.msk [vmem:[%s6] sm:$0xff] %vm100, %v99
  // Predicated region
  $region26: #{_lambda_.27} parent=0 // pred_check
    _
  $region27: #{_lambda_.27} parent=0 // pred_check_branch
    %103 = sbr.rel (0) target = $region29
  $region28: #{_lambda_.27} parent=0 // pred_region
    _
  $region29: #{_lambda_.27} parent=0 // pred_fallthru
    _
  // Predicated region
  $region30: #{_lambda_.27} parent=0 // pred_check
    _
  $region31: #{_lambda_.27} parent=0 // pred_check_branch
    %105 = sbr.rel (0) target = $region33
  $region32: #{_lambda_.27} parent=0 // pred_region
    _
  $region33: #{_lambda_.27} parent=0 // pred_fallthru
    _

// kernel: _lambda_.19
$region0: #{_lambda_.19}
  #allocation0 [shape = 'u32[]', space=smem, size = 0x4, offset = 0x4, fixed_abs, tag = 'smem constant byte address 0x4 - core index']
  #allocation1 [shape = 'u32[72,128]{1,0:T(1,128)}', space=vmem, size = 0x9000, scoped, tag = 'internal scratch']
  %s0 = inlined_call_operand.vmem [shape: f32[64,64], index: 0, kind: input, shape index: {}]
  %s1 = inlined_call_operand.vmem [shape: bf16[64,32], index: 1, kind: input, shape index: {}]
  %s2 = inlined_call_operand.vmem [shape: f32[1,32], index: 2, kind: input, shape index: {}]
  %s3 = inlined_call_operand.vmem [shape: f32[64,32], index: 3, kind: input, shape index: {}]
  %s4 = inlined_call_operand.vmem [shape: f32[1,32], index: 4, kind: input, shape index: {}]
  %s5 = inlined_call_operand.vmem [shape: f32[1,32], index: 5, kind: input, shape index: {}]
  %s6 = inlined_call_operand.vmem [shape: f32[64,32], index: 6, kind: output, shape index: {}]
  %s7 = sld [smem:[#allocation0]]
  $region34: #{_lambda_.19} parent=0
    _
  %s9 = ssub.s32 1, %s7
  %s10 = scalar_select 0, %s9, %s7
  // Predicated region
  $region2: #{_lambda_.19} parent=0 // pred_check
    _
  $region3: #{_lambda_.19} parent=0 // pred_check_branch
    %12 = sbr.rel (0) target = $region5
  $region4: #{_lambda_.19} parent=0 // pred_region
    _
  $region5: #{_lambda_.19} parent=0 // pred_fallthru
    _
  // Predicated region
  $region6: #{_lambda_.19} parent=0 // pred_check
    _
  $region7: #{_lambda_.19} parent=0 // pred_check_branch
    %14 = sbr.rel (0) target = $region9
  $region8: #{_lambda_.19} parent=0 // pred_region
    _
  $region9: #{_lambda_.19} parent=0 // pred_fallthru
    _
  // Predicated region
  $region10: #{_lambda_.19} parent=0 // pred_check
    _
  $region11: #{_lambda_.19} parent=0 // pred_check_branch
    %16 = sbr.rel (0) target = $region13
  $region12: #{_lambda_.19} parent=0 // pred_region
    _
  $region13: #{_lambda_.19} parent=0 // pred_fallthru
    _
  // Predicated region
  $region14: #{_lambda_.19} parent=0 // pred_check
    _
  $region15: #{_lambda_.19} parent=0 // pred_check_branch
    %18 = sbr.rel (0) target = $region17
  $region16: #{_lambda_.19} parent=0 // pred_region
    _
  $region17: #{_lambda_.19} parent=0 // pred_fallthru
    _
  // Predicated region
  $region18: #{_lambda_.19} parent=0 // pred_check
    _
  $region19: #{_lambda_.19} parent=0 // pred_check_branch
    %20 = sbr.rel (0) target = $region21
  $region20: #{_lambda_.19} parent=0 // pred_region
    _
  $region21: #{_lambda_.19} parent=0 // pred_fallthru
    _
  // Predicated region
  $region22: #{_lambda_.19} parent=0 // pred_check
    _
  $region23: #{_lambda_.19} parent=0 // pred_check_branch
    %22 = sbr.rel (0) target = $region25
  $region24: #{_lambda_.19} parent=0 // pred_region
    _
  $region25: #{_lambda_.19} parent=0 // pred_fallthru
    _
  %v24 = vld [vmem:[%s0] sm:$0xff]
  %v25 = vld [vmem:[%s0 + $0x8] sm:$0xff]
  %v26 = vld [vmem:[%s0 + $0x10] sm:$0xff]
  %v27 = vld [vmem:[%s0 + $0x18] sm:$0xff]
  %v28 = vld [vmem:[%s0 + $0x20] sm:$0xff]
  %v29 = vld [vmem:[%s0 + $0x28] sm:$0xff]
  %v30 = vld [vmem:[%s0 + $0x30] sm:$0xff]
  %v31 = vld [vmem:[%s0 + $0x38] sm:$0xff]
  %v32 = vpack.c.bf16 %v25, %v24
  %v33 = vpack.c.bf16 %v27, %v26
  %v34 = vpack.c.bf16 %v29, %v28
  %v35 = vpack.c.bf16 %v31, %v30
  %v36 = vld [vmem:[%s1] sm:$0xf]
  %v37 = vld [vmem:[%s1 + $0x4] sm:$0xf]
  %v38 = vld [vmem:[%s1 + $0x8] sm:$0xf]
  %v39 = vld [vmem:[%s1 + $0xc] sm:$0xf]
  %v40 = vld [vmem:[%s1 + $0x10] sm:$0xf]
  %v41 = vld [vmem:[%s1 + $0x14] sm:$0xf]
  %v42 = vld [vmem:[%s1 + $0x18] sm:$0xf]
  %v43 = vld [vmem:[%s1 + $0x1c] sm:$0xf]
  %v44 = vld [vmem:[%s2] sm:$0x1]
  %v46 = vperm.slane %v44, 0
  %v56 = vunpack.c.l.b16 %v36
  %v57 = vunpack.c.l.b16 %v37
  %v58 = vunpack.c.l.b16 %v38
  %v59 = vunpack.c.l.b16 %v39
  %v60 = vunpack.c.l.b16 %v40
  %v61 = vunpack.c.l.b16 %v41
  %v62 = vunpack.c.l.b16 %v42
  %v63 = vunpack.c.l.b16 %v43
  %v64 = vpack.c.b16 %v57, %v56
  %v65 = vpack.c.b16 %v59, %v58
  %v66 = vpack.c.b16 %v61, %v60
  %v67 = vpack.c.b16 %v63, %v62
  %vm72 = vcmask 523264
  %v74 = vsel %vm72, %v32, 0
  %v77 = vsel %vm72, %v33, 0
  %v80 = vsel %vm72, %v34, 0
  %v83 = vsel %vm72, %v35, 0
  %85 = vmatpush.bf16.msra.mxu0 0
  %86 = vmatpush.bf16.msra.mxu0 0
  %87 = vmatpush.bf16.msra.mxu0 0
  %88 = vmatpush.bf16.msra.mxu0 0
  %89 = vmatpush.bf16.msra.mxu0 %v67
  %90 = vmatpush.bf16.msra.mxu0 %v66
  %91 = vmatpush.bf16.msra.mxu0 %v65
  %92 = vmatpush.bf16.msra.mxu0 %v64
  %93 = vmatmul.bf16.gmra.mxu0 %v74
  %v94 = vpop.f32.mrf.mxu0
  %v95 = vadd.f32 %v46, %v94
  %v96 = vpop.f32.mrf.mxu0
  %v97 = vadd.f32 %v46, %v96
  %98 = vmatmul.bf16.gmra.mxu0 %v77
  %v99 = vpop.f32.mrf.mxu0
  %v100 = vadd.f32 %v46, %v99
  %v101 = vpop.f32.mrf.mxu0
  %v102 = vadd.f32 %v46, %v101
  %103 = vmatmul.bf16.gmra.mxu0 %v80
  %v104 = vpop.f32.mrf.mxu0
  %v105 = vadd.f32 %v46, %v104
  %v106 = vpop.f32.mrf.mxu0
  %v107 = vadd.f32 %v46, %v106
  %108 = vmatmul.bf16.gmra.mxu0 %v83
  %v109 = vpop.f32.mrf.mxu0
  %v110 = vadd.f32 %v46, %v109
  %v111 = vpop.f32.mrf.mxu0
  %v112 = vadd.f32 %v46, %v111
  %113 = vdwg.mxu0
  %v114 = vld [vmem:[%s3] sm:$0xff]
  %v115 = vld [vmem:[%s3 + $0x8] sm:$0xff]
  %v116 = vld [vmem:[%s3 + $0x10] sm:$0xff]
  %v117 = vld [vmem:[%s3 + $0x18] sm:$0xff]
  %v118 = vld [vmem:[%s3 + $0x20] sm:$0xff]
  %v119 = vld [vmem:[%s3 + $0x28] sm:$0xff]
  %v120 = vld [vmem:[%s3 + $0x30] sm:$0xff]
  %v121 = vld [vmem:[%s3 + $0x38] sm:$0xff]
  %v122 = vadd.f32 %v95, %v114
  %v123 = vadd.f32 %v97, %v115
  %v124 = vadd.f32 %v100, %v116
  %v125 = vadd.f32 %v102, %v117
  %v126 = vadd.f32 %v105, %v118
  %v127 = vadd.f32 %v107, %v119
  %v128 = vadd.f32 %v110, %v120
  %v129 = vadd.f32 %v112, %v121
  %vm130 = vcmask 261120
  %v131 = vsel %vm130, %v122, 0.0
  %132 = vadd.xlane.f32.xlu0 %v131
  %v133 = vpop.xlane.xlu0 %132
  %v134 = vsel %vm130, %v123, 0.0
  %135 = vadd.xlane.f32.xlu0 %v134
  %v136 = vpop.xlane.xlu0 %135
  %v137 = vsel %vm130, %v124, 0.0
  %138 = vadd.xlane.f32.xlu0 %v137
  %v139 = vpop.xlane.xlu0 %138
  %v140 = vsel %vm130, %v125, 0.0
  %141 = vadd.xlane.f32.xlu0 %v140
  %v142 = vpop.xlane.xlu0 %141
  %v143 = vsel %vm130, %v126, 0.0
  %144 = vadd.xlane.f32.xlu0 %v143
  %v145 = vpop.xlane.xlu0 %144
  %v146 = vsel %vm130, %v127, 0.0
  %147 = vadd.xlane.f32.xlu0 %v146
  %v148 = vpop.xlane.xlu0 %147
  %v149 = vsel %vm130, %v128, 0.0
  %150 = vadd.xlane.f32.xlu0 %v149
  %v151 = vpop.xlane.xlu0 %150
  %v152 = vsel %vm130, %v129, 0.0
  %153 = vadd.xlane.f32.xlu0 %v152
  %v154 = vpop.xlane.xlu0 %153
  %v155 = vrcp.pop 32.0
  %v156 = vmul.f32 32.0, %v155
  %v157 = vsub.f32 1.0, %v156
  %v158 = vmul.f32 %v155, %v157
  %v159 = vadd.f32 %v155, %v158
  %vm160 = vweird.f32 %v155
  %v161 = vsel %vm160, %v155, %v159
  %v162 = vmul.f32 %v133, %v161
  %v163 = vmul.f32 %v136, %v161
  %v164 = vmul.f32 %v139, %v161
  %v165 = vmul.f32 %v142, %v161
  %v166 = vmul.f32 %v145, %v161
  %v167 = vmul.f32 %v148, %v161
  %v168 = vmul.f32 %v151, %v161
  %v169 = vmul.f32 %v154, %v161
  %v170 = vsub.f32 %v122, %v162
  %v171 = vsub.f32 %v123, %v163
  %v172 = vsub.f32 %v124, %v164
  %v173 = vsub.f32 %v125, %v165
  %v174 = vsub.f32 %v126, %v166
  %v175 = vsub.f32 %v127, %v167
  %v176 = vsub.f32 %v128, %v168
  %v177 = vsub.f32 %v129, %v169
  %v178 = vmul.f32 %v170, %v170
  %v179 = vmul.f32 %v171, %v171
  %v180 = vmul.f32 %v172, %v172
  %v181 = vmul.f32 %v173, %v173
  %v182 = vmul.f32 %v174, %v174
  %v183 = vmul.f32 %v175, %v175
  %v184 = vmul.f32 %v176, %v176
  %v185 = vmul.f32 %v177, %v177
  %v186 = vsel %vm130, %v178, 0.0
  %187 = vadd.xlane.f32.xlu0 %v186
  %v188 = vpop.xlane.xlu0 %187
  %v189 = vsel %vm130, %v179, 0.0
  %190 = vadd.xlane.f32.xlu0 %v189
  %v191 = vpop.xlane.xlu0 %190
  %v192 = vsel %vm130, %v180, 0.0
  %193 = vadd.xlane.f32.xlu0 %v192
  %v194 = vpop.xlane.xlu0 %193
  %v195 = vsel %vm130, %v181, 0.0
  %196 = vadd.xlane.f32.xlu0 %v195
  %v197 = vpop.xlane.xlu0 %196
  %v198 = vsel %vm130, %v182, 0.0
  %199 = vadd.xlane.f32.xlu0 %v198
  %v200 = vpop.xlane.xlu0 %199
  %v201 = vsel %vm130, %v183, 0.0
  %202 = vadd.xlane.f32.xlu0 %v201
  %v203 = vpop.xlane.xlu0 %202
  %v204 = vsel %vm130, %v184, 0.0
  %205 = vadd.xlane.f32.xlu0 %v204
  %v206 = vpop.xlane.xlu0 %205
  %v207 = vsel %vm130, %v185, 0.0
  %208 = vadd.xlane.f32.xlu0 %v207
  %v209 = vpop.xlane.xlu0 %208
  %v210 = vmul.f32 %v188, %v161
  %v211 = vmul.f32 %v191, %v161
  %v212 = vmul.f32 %v194, %v161
  %v213 = vmul.f32 %v197, %v161
  %v214 = vmul.f32 %v200, %v161
  %v215 = vmul.f32 %v203, %v161
  %v216 = vmul.f32 %v206, %v161
  %v217 = vmul.f32 %v209, %v161
  %v218 = vadd.f32 %v210, 1e-05
  %v219 = vadd.f32 %v211, 1e-05
  %v220 = vadd.f32 %v212, 1e-05
  %v221 = vadd.f32 %v213, 1e-05
  %v222 = vadd.f32 %v214, 1e-05
  %v223 = vadd.f32 %v215, 1e-05
  %v224 = vadd.f32 %v216, 1e-05
  %v225 = vadd.f32 %v217, 1e-05
  %v226 = vrsqrt.pop %v218
  %v227 = vmul.f32 %v226, %v218
  %v228 = vmul.f32 %v227, %v226
  %v229 = vmul.f32 0.5, %v228
  %v230 = vsub.f32 1.5, %v229
  %v231 = vmul.f32 %v226, %v230
  %vm232 = vweird.f32 %v218
  %vm233 = vweird.f32 %v226
  %vm234 = vmor %vm232, %vm233
  %v235 = vsel %vm234, %v226, %v231
  %v236 = vrsqrt.pop %v219
  %v237 = vmul.f32 %v236, %v219
  %v238 = vmul.f32 %v237, %v236
  %v239 = vmul.f32 0.5, %v238
  %v240 = vsub.f32 1.5, %v239
  %v241 = vmul.f32 %v236, %v240
  %vm242 = vweird.f32 %v219
  %vm243 = vweird.f32 %v236
  %vm244 = vmor %vm242, %vm243
  %v245 = vsel %vm244, %v236, %v241
  %v246 = vrsqrt.pop %v220
  %v247 = vmul.f32 %v246, %v220
  %v248 = vmul.f32 %v247, %v246
  %v249 = vmul.f32 0.5, %v248
  %v250 = vsub.f32 1.5, %v249
  %v251 = vmul.f32 %v246, %v250
  %vm252 = vweird.f32 %v220
  %vm253 = vweird.f32 %v246
  %vm254 = vmor %vm252, %vm253
  %v255 = vsel %vm254, %v246, %v251
  %v256 = vrsqrt.pop %v221
  %v257 = vmul.f32 %v256, %v221
  %v258 = vmul.f32 %v257, %v256
  %v259 = vmul.f32 0.5, %v258
  %v260 = vsub.f32 1.5, %v259
  %v261 = vmul.f32 %v256, %v260
  %vm262 = vweird.f32 %v221
  %vm263 = vweird.f32 %v256
  %vm264 = vmor %vm262, %vm263
  %v265 = vsel %vm264, %v256, %v261
  %v266 = vrsqrt.pop %v222
  %v267 = vmul.f32 %v266, %v222
  %v268 = vmul.f32 %v267, %v266
  %v269 = vmul.f32 0.5, %v268
  %v270 = vsub.f32 1.5, %v269
  %v271 = vmul.f32 %v266, %v270
  %vm272 = vweird.f32 %v222
  %vm273 = vweird.f32 %v266
  %vm274 = vmor %vm272, %vm273
  %v275 = vsel %vm274, %v266, %v271
  %v276 = vrsqrt.pop %v223
  %v277 = vmul.f32 %v276, %v223
  %v278 = vmul.f32 %v277, %v276
  %v279 = vmul.f32 0.5, %v278
  %v280 = vsub.f32 1.5, %v279
  %v281 = vmul.f32 %v276, %v280
  %vm282 = vweird.f32 %v223
  %vm283 = vweird.f32 %v276
  %vm284 = vmor %vm282, %vm283
  %v285 = vsel %vm284, %v276, %v281
  %v286 = vrsqrt.pop %v224
  %v287 = vmul.f32 %v286, %v224
  %v288 = vmul.f32 %v287, %v286
  %v289 = vmul.f32 0.5, %v288
  %v290 = vsub.f32 1.5, %v289
  %v291 = vmul.f32 %v286, %v290
  %vm292 = vweird.f32 %v224
  %vm293 = vweird.f32 %v286
  %vm294 = vmor %vm292, %vm293
  %v295 = vsel %vm294, %v286, %v291
  %v296 = vrsqrt.pop %v225
  %v297 = vmul.f32 %v296, %v225
  %v298 = vmul.f32 %v297, %v296
  %v299 = vmul.f32 0.5, %v298
  %v300 = vsub.f32 1.5, %v299
  %v301 = vmul.f32 %v296, %v300
  %vm302 = vweird.f32 %v225
  %vm303 = vweird.f32 %v296
  %vm304 = vmor %vm302, %vm303
  %v305 = vsel %vm304, %v296, %v301
  %v306 = vmul.f32 %v170, %v235
  %v307 = vmul.f32 %v171, %v245
  %v308 = vmul.f32 %v172, %v255
  %v309 = vmul.f32 %v173, %v265
  %v310 = vmul.f32 %v174, %v275
  %v311 = vmul.f32 %v175, %v285
  %v312 = vmul.f32 %v176, %v295
  %v313 = vmul.f32 %v177, %v305
  %v314 = vld [vmem:[%s4] sm:$0x1]
  %v316 = vperm.slane %v314, 0
  %v318 = vmul.f32 %v306, %v316
  %v319 = vmul.f32 %v307, %v316
  %v320 = vmul.f32 %v308, %v316
  %v321 = vmul.f32 %v309, %v316
  %v322 = vmul.f32 %v310, %v316
  %v323 = vmul.f32 %v311, %v316
  %v324 = vmul.f32 %v312, %v316
  %v325 = vmul.f32 %v313, %v316
  %v326 = vld [vmem:[%s5] sm:$0x1]
  %v328 = vperm.slane %v326, 0
  %v330 = vadd.f32 %v318, %v328
  %v331 = vadd.f32 %v319, %v328
  %v332 = vadd.f32 %v320, %v328
  %v333 = vadd.f32 %v321, %v328
  %v334 = vadd.f32 %v322, %v328
  %v335 = vadd.f32 %v323, %v328
  %v336 = vadd.f32 %v324, %v328
  %v337 = vadd.f32 %v325, %v328
  %338 = vst.msk [vmem:[%s6] sm:$0xff] %vm130, %v330
  %339 = vst.msk [vmem:[%s6 + $0x8] sm:$0xff] %vm130, %v331
  %340 = vst.msk [vmem:[%s6 + $0x10] sm:$0xff] %vm130, %v332
  %341 = vst.msk [vmem:[%s6 + $0x18] sm:$0xff] %vm130, %v333
  %342 = vst.msk [vmem:[%s6 + $0x20] sm:$0xff] %vm130, %v334
  %343 = vst.msk [vmem:[%s6 + $0x28] sm:$0xff] %vm130, %v335
  %344 = vst.msk [vmem:[%s6 + $0x30] sm:$0xff] %vm130, %v336
  %345 = vst.msk [vmem:[%s6 + $0x38] sm:$0xff] %vm130, %v337
  // Predicated region
  $region26: #{_lambda_.19} parent=0 // pred_check
    _
  $region27: #{_lambda_.19} parent=0 // pred_check_branch
    %347 = sbr.rel (0) target = $region29
  $region28: #{_lambda_.19} parent=0 // pred_region
    _
  $region29: #{_lambda_.19} parent=0 // pred_fallthru
    _
  // Predicated region
  $region30: #{_lambda_.19} parent=0 // pred_check
    _
  $region31: #{_lambda_.19} parent=0 // pred_check_branch
    %349 = sbr.rel (0) target = $region33
  $region32: #{_lambda_.19} parent=0 // pred_region
    _
  $region33: #{_lambda_.19} parent=0 // pred_fallthru
    _

</llo_original>
